<compile_context>
chip_gen: v5e
topology: v5e:2x2
jax: 0.10.0
libtpu: 0.0.40
codegen_flags: <defaults>
</compile_context>

<pallas_src>
import numpy as np
import jax
import jax.numpy as jnp
from jax import lax
from jax.experimental import pallas as pl
from jax.experimental.pallas import tpu as pltpu

SEQ_LEN = 24   # fixed by Linear(384, 512): 128 channels * (24 / 2 / 2 / 2) = 384
C1, C2, C3 = 64, 64, 128


def _round_up(n, m):
    return -(-n // m) * m


def _pick_tb(batch, tb_max=512):
    """Batch-tile size: multiple of 8, capped at tb_max, sized to the real
    batch when small, and >= 2 grid steps when the batch allows it."""
    if batch <= 8:
        return 8
    return int(min(tb_max, _round_up(-(-batch // 2), 8)))


# --------------------------------------------------------------------------- #
# kernel helpers (traced inside the kernel)                                    #
# --------------------------------------------------------------------------- #
def _conv_pool_stacked(h, w_ref, b_ref, tb):
    """conv1d(k=3, pad=1) + MaxPool1d(2) on a position-major stacked slab.

    h:     (L*tb, Cin) f32; rows [l*tb:(l+1)*tb] = position l of the batch tile.
    w_ref: (3*Cin, Cout) tap-major weights (row k*Cin + c; tap k hits x[l-1+k]).
    b_ref: (1, Cout).
    Returns (L//2*tb, Cout) f32, same position-major stacking.
    """
    ltb, cin = h.shape
    L = ltb // tb
    cout = w_ref.shape[-1]
    w = w_ref[...]
    hc = h.astype(w.dtype)                       # bf16 (or f32) MXU operands
    # One big matmul per tap (M = L*tb) instead of L per-position dots.
    a0 = jnp.dot(hc, w[:cin], preferred_element_type=jnp.float32)
    a1 = jnp.dot(hc, w[cin:2 * cin], preferred_element_type=jnp.float32)
    a2 = jnp.dot(hc, w[2 * cin:], preferred_element_type=jnp.float32)
    zero = jnp.zeros((tb, cout), jnp.float32)
    # y[l] = a0[l-1] + a1[l] + a2[l+1]  (zero padding at the sequence edges);
    # shifts are whole-TB-row concats -> sublane aligned, no lane repacking.
    y = (a1
         + jnp.concatenate([zero, a0[:ltb - tb]], axis=0)
         + jnp.concatenate([a2[tb:], zero], axis=0)
         + b_ref[...])                           # bias broadcast once per stage
    # MaxPool1d(2): max of the even / odd position blocks.
    pooled = [jnp.maximum(y[(2 * j) * tb:(2 * j + 1) * tb],
                          y[(2 * j + 1) * tb:(2 * j + 2) * tb])
              for j in range(L // 2)]
    return jnp.concatenate(pooled, axis=0)


# ------------------------------------ fused forward pass, TB samples / step --
def convnet_kernel(x_ref, w1_ref, b1_ref, w2_ref, b2_ref, w3_ref, b3_ref,
                   wf1_ref, bf1_ref, wf2_ref, bf2_ref, wf3_ref, bf3_ref,
                   out_ref):
    tb = x_ref.shape[0]
    x = x_ref[...]                                         # (tb, 24) f32

    # ---- conv1 (Cin=1) + pool1 on the VPU: per position, 3 broadcast-FMAs
    #      (x column * w1 row); pool fused pairwise; bias hoisted.  No MXU
    #      dots and no lane-unaligned (tb, 3) slices.
    w1 = w1_ref[...]                                       # (3, 64) f32
    wrow = [jnp.broadcast_to(w1[k:k + 1, :], (tb, C1)) for k in range(3)]
    xcol = [jnp.broadcast_to(x[:, l:l + 1], (tb, C1)) for l in range(SEQ_LEN)]
    pooled = []
    for j in range(SEQ_LEN // 2):
        l0, l1 = 2 * j, 2 * j + 1
        y0 = xcol[l0] * wrow[1] + xcol[l1] * wrow[2]       # conv at position l0
        if l0 > 0:
            y0 = y0 + xcol[l0 - 1] * wrow[0]
        y1 = xcol[l0] * wrow[0] + xcol[l1] * wrow[1]       # conv at position l1
        if l1 < SEQ_LEN - 1:
            y1 = y1 + xcol[l1 + 1] * wrow[2]
        pooled.append(jnp.maximum(y0, y1))                 # MaxPool1d(2), fused
    h = jnp.concatenate(pooled, axis=0) + b1_ref[...]      # (12*tb, 64) stacked

    # ---- conv2 + pool2, conv3 + pool3: 3 big tap matmuls per stage.
    h = _conv_pool_stacked(h, w2_ref, b2_ref, tb)          # (6*tb, 64)
    h = _conv_pool_stacked(h, w3_ref, b3_ref, tb)          # (3*tb, 128)

    # ---- fc1: lane-concat the 3 position blocks (seams at lanes 128/256 ->
    #      vreg aligned, free) and do a single K=384 dot.  PyTorch flatten
    #      order (c*3 + l) is folded into the wf1 layout by the wrapper.
    mm_dtype = wf1_ref.dtype
    f = jnp.concatenate([h[:tb], h[tb:2 * tb], h[2 * tb:]], axis=1)  # (tb, 384)
    z = jnp.dot(f.astype(mm_dtype), wf1_ref[...],
                preferred_element_type=jnp.float32) + bf1_ref[...]
    z = jnp.maximum(z, 0.0)                                          # (tb, 512)
    z = jnp.dot(z.astype(mm_dtype), wf2_ref[...],
                preferred_element_type=jnp.float32) + bf2_ref[...]
    z = jnp.maximum(z, 0.0)                                          # (tb, 128)

    # ---- fc3 + sigmoid, produced lane-dense as (1, tb): contract wf3 (1,128)
    #      against z (tb,128) on their last dims.
    logit = lax.dot_general(wf3_ref[...], z.astype(mm_dtype),
                            (((1,), (1,)), ((), ())),
                            preferred_element_type=jnp.float32) + bf3_ref[...]
    out_ref[0] = pl.reciprocal(1.0 + jnp.exp(-logit), approx=False)


# -------------------------------------------------- wrapper / parameter glue --
def conv_net_forward(x, params, *, tb=None, tb_max=512,
                     matmul_dtype=jnp.bfloat16):
    """Fused conv_net forward.  `matmul_dtype` is the MXU operand dtype
    (bfloat16 by default; pass jnp.float32 for exact parity checks)."""
    B, L = x.shape
    assert L == SEQ_LEN, "Linear(384, 512) requires input length 24"
    if tb is None:
        tb = _pick_tb(B, tb_max)
    tb = max(8, _round_up(tb, 8))
    num_tiles = -(-B // tb)
    b_pad = num_tiles * tb
    xk = x.astype(jnp.float32)
    if b_pad != B:
        xk = jnp.pad(xk, ((0, b_pad - B), (0, 0)))         # pad batch to TB mult

    mmd = matmul_dtype
    # PyTorch conv weights (Cout, Cin, K) -> tap-major (K*Cin, Cout);
    # Linear (out, in) -> (in, out).  MXU operands cast to `matmul_dtype`;
    # conv1 (VPU) weights and all biases stay f32 (accumulation is f32).
    w1k = jnp.transpose(params["w1"][:, 0, :], (1, 0))                      # (3, 64)
    b1k = params["b1"].reshape(1, -1)
    w2k = jnp.transpose(params["w2"], (2, 1, 0)).reshape(3 * C1, C2).astype(mmd)
    b2k = params["b2"].reshape(1, -1)
    w3k = jnp.transpose(params["w3"], (2, 1, 0)).reshape(3 * C2, C3).astype(mmd)
    b3k = params["b3"].reshape(1, -1)
    # fc1: flatten index j = c*3 + l  ->  kernel lane index l*128 + c.
    wf1k = jnp.transpose(params["wf1"].reshape(512, C3, 3), (2, 1, 0))
    wf1k = wf1k.reshape(3 * C3, 512).astype(mmd)                            # (384, 512)
    bf1k = params["bf1"].reshape(1, -1)
    wf2k = jnp.transpose(params["wf2"]).astype(mmd)                         # (512, 128)
    bf2k = params["bf2"].reshape(1, -1)
    wf3k = params["wf3"].reshape(1, C3).astype(mmd)                         # (1, 128)
    bf3k = params["bf3"].reshape(1, 1)

    def full(shape):
        zeros = (0,) * len(shape)
        return pl.BlockSpec(shape, lambda i, _z=zeros: _z)

    in_specs = [
        pl.BlockSpec((tb, SEQ_LEN), lambda i: (i, 0)),     # x: one batch tile / step
        full((3, C1)), full((1, C1)),
        full((3 * C1, C2)), full((1, C2)),
        full((3 * C2, C3)), full((1, C3)),
        full((3 * C3, 512)), full((1, 512)),
        full((512, C3)), full((1, C3)),
        full((1, C3)), full((1, 1)),
    ]
    out = pl.pallas_call(
        convnet_kernel,
        out_shape=jax.ShapeDtypeStruct((num_tiles, 1, tb), jnp.float32),
        grid=(num_tiles,),
        in_specs=in_specs,
        # lane-dense per-tile output row; batch-tile axis is parallel
        # (shards across v7x's two TensorCores when num_tiles >= 2).
        out_specs=pl.BlockSpec((1, 1, tb), lambda i: (i, 0, 0)),
        compiler_params=pltpu.CompilerParams(
            dimension_semantics=("parallel",),
            vmem_limit_bytes=32 * 1024 * 1024),
    )(xk, w1k, b1k, w2k, b2k, w3k, b3k, wf1k, bf1k, wf2k, bf2k, wf3k, bf3k)
    return out.reshape(b_pad, 1)[:B]


# ----------------------------------------------- deterministic init + reference
def init_params(key):
    ks = jax.random.split(key, 12)

    def u(k, shape, fan_in):
        bound = 1.0 / np.sqrt(fan_in)
        return jax.random.uniform(k, shape, jnp.float32, -bound, bound)

    return {
        "w1": u(ks[0], (64, 1, 3), 3),      "b1": u(ks[1], (64,), 3),
        "w2": u(ks[2], (64, 64, 3), 192),   "b2": u(ks[3], (64,), 192),
        "w3": u(ks[4], (128, 64, 3), 192),  "b3": u(ks[5], (128,), 192),
        "wf1": u(ks[6], (512, 384), 384),   "bf1": u(ks[7], (512,), 384),
        "wf2": u(ks[8], (128, 512), 512),   "bf2": u(ks[9], (128,), 512),
        "wf3": u(ks[10], (1, 128), 128),    "bf3": u(ks[11], (1,), 128),
    }


def reference_forward(x, p):
    """Pure-JAX replica of the PyTorch forward (NCL layout), for verification."""
    def conv1d(h, w, b):
        L = h.shape[2]
        hp = jnp.pad(h, ((0, 0), (0, 0), (1, 1)))
        y = sum(jnp.einsum("bcl,oc->bol", hp[:, :, k:k + L], w[:, :, k],
                           precision=lax.Precision.HIGHEST) for k in range(3))
        return y + b[None, :, None]

    def maxpool2(h):
        B, C, L = h.shape
        return h.reshape(B, C, L // 2, 2).max(axis=-1)

    h = x[:, None, :]                                  # (B, 1, 24)
    h = maxpool2(conv1d(h, p["w1"], p["b1"]))
    h = maxpool2(conv1d(h, p["w2"], p["b2"]))
    h = maxpool2(conv1d(h, p["w3"], p["b3"]))
    f = h.reshape(h.shape[0], -1)                      # (B, 384), PyTorch flatten order
    z = jnp.maximum(jnp.dot(f, p["wf1"].T, precision=lax.Precision.HIGHEST) + p["bf1"], 0.0)
    z = jnp.maximum(jnp.dot(z, p["wf2"].T, precision=lax.Precision.HIGHEST) + p["bf2"], 0.0)
    return jax.nn.sigmoid(jnp.dot(z, p["wf3"].T, precision=lax.Precision.HIGHEST) + p["bf3"])


if __name__ == "__main__":
    key = jax.random.PRNGKey(0)
    kx, kp = jax.random.split(key)
    B = 4
    x = jax.random.normal(kx, (B, SEQ_LEN), jnp.float32)
    params = init_params(kp)

    ref = reference_forward(x, params)

    # Exact-parity path: f32 MXU operands vs the pure-JAX reference.
    out_f32 = conv_net_forward(x, params, matmul_dtype=jnp.float32)
    jax.block_until_ready(out_f32)
    assert out_f32.shape == (B, 1)
    np.testing.assert_allclose(np.asarray(out_f32), np.asarray(ref),
                               rtol=0, atol=2e-3)

    # Default fast path: bf16 MXU operands, f32 accumulation / f32 VPU math.
    out_bf16 = conv_net_forward(x, params)
    jax.block_until_ready(out_bf16)
    assert out_bf16.shape == (B, 1)
    np.testing.assert_allclose(np.asarray(out_bf16), np.asarray(ref),
                               rtol=0, atol=5e-3)

    print("KERNEL_OK")
</pallas_src>

<mosaic_0001>
module attributes {stable_mosaic.version = 11 : i64} {
  func.func @convnet_kernel(%arg0: i32, %arg1: memref<8x24xf32, #tpu.memory_space<vmem>>, %arg2: memref<3x64xf32, #tpu.memory_space<vmem>>, %arg3: memref<1x64xf32, #tpu.memory_space<vmem>>, %arg4: memref<192x64xf32, #tpu.memory_space<vmem>>, %arg5: memref<1x64xf32, #tpu.memory_space<vmem>>, %arg6: memref<192x128xf32, #tpu.memory_space<vmem>>, %arg7: memref<1x128xf32, #tpu.memory_space<vmem>>, %arg8: memref<384x512xf32, #tpu.memory_space<vmem>>, %arg9: memref<1x512xf32, #tpu.memory_space<vmem>>, %arg10: memref<512x128xf32, #tpu.memory_space<vmem>>, %arg11: memref<1x128xf32, #tpu.memory_space<vmem>>, %arg12: memref<1x128xf32, #tpu.memory_space<vmem>>, %arg13: memref<1x1xf32, #tpu.memory_space<vmem>>, %arg14: memref<1x1x8xf32, #tpu.memory_space<vmem>>) attributes {dimension_semantics = [#tpu.dimension_semantics<parallel>], iteration_bounds = array<i64: 1>, scalar_prefetch = 0 : i64, scratch_operands = 0 : i64, tpu.core_type = #tpu.core_type<tc>, window_params = [{transform_indices = @transform_0, window_bounds = array<i64: 8, 24>}, {pipeline_mode = #tpu.pipeline_mode<synchronous>, transform_indices = @transform_1, window_bounds = array<i64: 3, 64>}, {pipeline_mode = #tpu.pipeline_mode<synchronous>, transform_indices = @transform_2, window_bounds = array<i64: 1, 64>}, {pipeline_mode = #tpu.pipeline_mode<synchronous>, transform_indices = @transform_3, window_bounds = array<i64: 192, 64>}, {pipeline_mode = #tpu.pipeline_mode<synchronous>, transform_indices = @transform_4, window_bounds = array<i64: 1, 64>}, {pipeline_mode = #tpu.pipeline_mode<synchronous>, transform_indices = @transform_5, window_bounds = array<i64: 192, 128>}, {pipeline_mode = #tpu.pipeline_mode<synchronous>, transform_indices = @transform_6, window_bounds = array<i64: 1, 128>}, {pipeline_mode = #tpu.pipeline_mode<synchronous>, transform_indices = @transform_7, window_bounds = array<i64: 384, 512>}, {pipeline_mode = #tpu.pipeline_mode<synchronous>, transform_indices = @transform_8, window_bounds = array<i64: 1, 512>}, {pipeline_mode = #tpu.pipeline_mode<synchronous>, transform_indices = @transform_9, window_bounds = array<i64: 512, 128>}, {pipeline_mode = #tpu.pipeline_mode<synchronous>, transform_indices = @transform_10, window_bounds = array<i64: 1, 128>}, {pipeline_mode = #tpu.pipeline_mode<synchronous>, transform_indices = @transform_11, window_bounds = array<i64: 1, 128>}, {pipeline_mode = #tpu.pipeline_mode<synchronous>, transform_indices = @transform_12, window_bounds = array<i64: 1, 1>}, {transform_indices = @transform_13, window_bounds = array<i64: 1, 1, 8>}]} {
    %c0 = arith.constant 0 : index
    %c0_0 = arith.constant 0 : index
    %0 = vector.load %arg1[%c0, %c0_0] : memref<8x24xf32, #tpu.memory_space<vmem>>, vector<8x24xf32>
    %c0_1 = arith.constant 0 : index
    %c0_2 = arith.constant 0 : index
    %1 = vector.load %arg2[%c0_1, %c0_2] : memref<3x64xf32, #tpu.memory_space<vmem>>, vector<3x64xf32>
    %2 = vector.extract_strided_slice %1 {offsets = [0, 0], sizes = [1, 64], strides = [1, 1]} : vector<3x64xf32> to vector<1x64xf32>
    %3 = vector.shape_cast %2 : vector<1x64xf32> to vector<1x64xf32>
    %4 = vector.broadcast %3 : vector<1x64xf32> to vector<8x64xf32>
    %5 = vector.extract_strided_slice %1 {offsets = [1, 0], sizes = [1, 64], strides = [1, 1]} : vector<3x64xf32> to vector<1x64xf32>
    %6 = vector.shape_cast %5 : vector<1x64xf32> to vector<1x64xf32>
    %7 = vector.broadcast %6 : vector<1x64xf32> to vector<8x64xf32>
    %8 = vector.extract_strided_slice %1 {offsets = [2, 0], sizes = [1, 64], strides = [1, 1]} : vector<3x64xf32> to vector<1x64xf32>
    %9 = vector.shape_cast %8 : vector<1x64xf32> to vector<1x64xf32>
    %10 = vector.broadcast %9 : vector<1x64xf32> to vector<8x64xf32>
    %11 = vector.extract_strided_slice %0 {offsets = [0, 0], sizes = [8, 1], strides = [1, 1]} : vector<8x24xf32> to vector<8x1xf32>
    %12 = vector.shape_cast %11 : vector<8x1xf32> to vector<8x1xf32>
    %13 = vector.broadcast %12 : vector<8x1xf32> to vector<8x64xf32>
    %14 = vector.extract_strided_slice %0 {offsets = [0, 1], sizes = [8, 1], strides = [1, 1]} : vector<8x24xf32> to vector<8x1xf32>
    %15 = vector.shape_cast %14 : vector<8x1xf32> to vector<8x1xf32>
    %16 = vector.broadcast %15 : vector<8x1xf32> to vector<8x64xf32>
    %17 = vector.extract_strided_slice %0 {offsets = [0, 2], sizes = [8, 1], strides = [1, 1]} : vector<8x24xf32> to vector<8x1xf32>
    %18 = vector.shape_cast %17 : vector<8x1xf32> to vector<8x1xf32>
    %19 = vector.broadcast %18 : vector<8x1xf32> to vector<8x64xf32>
    %20 = vector.extract_strided_slice %0 {offsets = [0, 3], sizes = [8, 1], strides = [1, 1]} : vector<8x24xf32> to vector<8x1xf32>
    %21 = vector.shape_cast %20 : vector<8x1xf32> to vector<8x1xf32>
    %22 = vector.broadcast %21 : vector<8x1xf32> to vector<8x64xf32>
    %23 = vector.extract_strided_slice %0 {offsets = [0, 4], sizes = [8, 1], strides = [1, 1]} : vector<8x24xf32> to vector<8x1xf32>
    %24 = vector.shape_cast %23 : vector<8x1xf32> to vector<8x1xf32>
    %25 = vector.broadcast %24 : vector<8x1xf32> to vector<8x64xf32>
    %26 = vector.extract_strided_slice %0 {offsets = [0, 5], sizes = [8, 1], strides = [1, 1]} : vector<8x24xf32> to vector<8x1xf32>
    %27 = vector.shape_cast %26 : vector<8x1xf32> to vector<8x1xf32>
    %28 = vector.broadcast %27 : vector<8x1xf32> to vector<8x64xf32>
    %29 = vector.extract_strided_slice %0 {offsets = [0, 6], sizes = [8, 1], strides = [1, 1]} : vector<8x24xf32> to vector<8x1xf32>
    %30 = vector.shape_cast %29 : vector<8x1xf32> to vector<8x1xf32>
    %31 = vector.broadcast %30 : vector<8x1xf32> to vector<8x64xf32>
    %32 = vector.extract_strided_slice %0 {offsets = [0, 7], sizes = [8, 1], strides = [1, 1]} : vector<8x24xf32> to vector<8x1xf32>
    %33 = vector.shape_cast %32 : vector<8x1xf32> to vector<8x1xf32>
    %34 = vector.broadcast %33 : vector<8x1xf32> to vector<8x64xf32>
    %35 = vector.extract_strided_slice %0 {offsets = [0, 8], sizes = [8, 1], strides = [1, 1]} : vector<8x24xf32> to vector<8x1xf32>
    %36 = vector.shape_cast %35 : vector<8x1xf32> to vector<8x1xf32>
    %37 = vector.broadcast %36 : vector<8x1xf32> to vector<8x64xf32>
    %38 = vector.extract_strided_slice %0 {offsets = [0, 9], sizes = [8, 1], strides = [1, 1]} : vector<8x24xf32> to vector<8x1xf32>
    %39 = vector.shape_cast %38 : vector<8x1xf32> to vector<8x1xf32>
    %40 = vector.broadcast %39 : vector<8x1xf32> to vector<8x64xf32>
    %41 = vector.extract_strided_slice %0 {offsets = [0, 10], sizes = [8, 1], strides = [1, 1]} : vector<8x24xf32> to vector<8x1xf32>
    %42 = vector.shape_cast %41 : vector<8x1xf32> to vector<8x1xf32>
    %43 = vector.broadcast %42 : vector<8x1xf32> to vector<8x64xf32>
    %44 = vector.extract_strided_slice %0 {offsets = [0, 11], sizes = [8, 1], strides = [1, 1]} : vector<8x24xf32> to vector<8x1xf32>
    %45 = vector.shape_cast %44 : vector<8x1xf32> to vector<8x1xf32>
    %46 = vector.broadcast %45 : vector<8x1xf32> to vector<8x64xf32>
    %47 = vector.extract_strided_slice %0 {offsets = [0, 12], sizes = [8, 1], strides = [1, 1]} : vector<8x24xf32> to vector<8x1xf32>
    %48 = vector.shape_cast %47 : vector<8x1xf32> to vector<8x1xf32>
    %49 = vector.broadcast %48 : vector<8x1xf32> to vector<8x64xf32>
    %50 = vector.extract_strided_slice %0 {offsets = [0, 13], sizes = [8, 1], strides = [1, 1]} : vector<8x24xf32> to vector<8x1xf32>
    %51 = vector.shape_cast %50 : vector<8x1xf32> to vector<8x1xf32>
    %52 = vector.broadcast %51 : vector<8x1xf32> to vector<8x64xf32>
    %53 = vector.extract_strided_slice %0 {offsets = [0, 14], sizes = [8, 1], strides = [1, 1]} : vector<8x24xf32> to vector<8x1xf32>
    %54 = vector.shape_cast %53 : vector<8x1xf32> to vector<8x1xf32>
    %55 = vector.broadcast %54 : vector<8x1xf32> to vector<8x64xf32>
    %56 = vector.extract_strided_slice %0 {offsets = [0, 15], sizes = [8, 1], strides = [1, 1]} : vector<8x24xf32> to vector<8x1xf32>
    %57 = vector.shape_cast %56 : vector<8x1xf32> to vector<8x1xf32>
    %58 = vector.broadcast %57 : vector<8x1xf32> to vector<8x64xf32>
    %59 = vector.extract_strided_slice %0 {offsets = [0, 16], sizes = [8, 1], strides = [1, 1]} : vector<8x24xf32> to vector<8x1xf32>
    %60 = vector.shape_cast %59 : vector<8x1xf32> to vector<8x1xf32>
    %61 = vector.broadcast %60 : vector<8x1xf32> to vector<8x64xf32>
    %62 = vector.extract_strided_slice %0 {offsets = [0, 17], sizes = [8, 1], strides = [1, 1]} : vector<8x24xf32> to vector<8x1xf32>
    %63 = vector.shape_cast %62 : vector<8x1xf32> to vector<8x1xf32>
    %64 = vector.broadcast %63 : vector<8x1xf32> to vector<8x64xf32>
    %65 = vector.extract_strided_slice %0 {offsets = [0, 18], sizes = [8, 1], strides = [1, 1]} : vector<8x24xf32> to vector<8x1xf32>
    %66 = vector.shape_cast %65 : vector<8x1xf32> to vector<8x1xf32>
    %67 = vector.broadcast %66 : vector<8x1xf32> to vector<8x64xf32>
    %68 = vector.extract_strided_slice %0 {offsets = [0, 19], sizes = [8, 1], strides = [1, 1]} : vector<8x24xf32> to vector<8x1xf32>
    %69 = vector.shape_cast %68 : vector<8x1xf32> to vector<8x1xf32>
    %70 = vector.broadcast %69 : vector<8x1xf32> to vector<8x64xf32>
    %71 = vector.extract_strided_slice %0 {offsets = [0, 20], sizes = [8, 1], strides = [1, 1]} : vector<8x24xf32> to vector<8x1xf32>
    %72 = vector.shape_cast %71 : vector<8x1xf32> to vector<8x1xf32>
    %73 = vector.broadcast %72 : vector<8x1xf32> to vector<8x64xf32>
    %74 = vector.extract_strided_slice %0 {offsets = [0, 21], sizes = [8, 1], strides = [1, 1]} : vector<8x24xf32> to vector<8x1xf32>
    %75 = vector.shape_cast %74 : vector<8x1xf32> to vector<8x1xf32>
    %76 = vector.broadcast %75 : vector<8x1xf32> to vector<8x64xf32>
    %77 = vector.extract_strided_slice %0 {offsets = [0, 22], sizes = [8, 1], strides = [1, 1]} : vector<8x24xf32> to vector<8x1xf32>
    %78 = vector.shape_cast %77 : vector<8x1xf32> to vector<8x1xf32>
    %79 = vector.broadcast %78 : vector<8x1xf32> to vector<8x64xf32>
    %80 = vector.extract_strided_slice %0 {offsets = [0, 23], sizes = [8, 1], strides = [1, 1]} : vector<8x24xf32> to vector<8x1xf32>
    %81 = vector.shape_cast %80 : vector<8x1xf32> to vector<8x1xf32>
    %82 = vector.broadcast %81 : vector<8x1xf32> to vector<8x64xf32>
    %83 = arith.mulf %13, %7 : vector<8x64xf32>
    %84 = arith.mulf %16, %10 : vector<8x64xf32>
    %85 = arith.addf %83, %84 : vector<8x64xf32>
    %86 = arith.mulf %13, %4 : vector<8x64xf32>
    %87 = arith.mulf %16, %7 : vector<8x64xf32>
    %88 = arith.addf %86, %87 : vector<8x64xf32>
    %89 = arith.mulf %19, %10 : vector<8x64xf32>
    %90 = arith.addf %88, %89 : vector<8x64xf32>
    %91 = arith.maximumf %85, %90 : vector<8x64xf32>
    %92 = arith.mulf %19, %7 : vector<8x64xf32>
    %93 = arith.mulf %22, %10 : vector<8x64xf32>
    %94 = arith.addf %92, %93 : vector<8x64xf32>
    %95 = arith.mulf %16, %4 : vector<8x64xf32>
    %96 = arith.addf %94, %95 : vector<8x64xf32>
    %97 = arith.mulf %19, %4 : vector<8x64xf32>
    %98 = arith.mulf %22, %7 : vector<8x64xf32>
    %99 = arith.addf %97, %98 : vector<8x64xf32>
    %100 = arith.mulf %25, %10 : vector<8x64xf32>
    %101 = arith.addf %99, %100 : vector<8x64xf32>
    %102 = arith.maximumf %96, %101 : vector<8x64xf32>
    %103 = arith.mulf %25, %7 : vector<8x64xf32>
    %104 = arith.mulf %28, %10 : vector<8x64xf32>
    %105 = arith.addf %103, %104 : vector<8x64xf32>
    %106 = arith.mulf %22, %4 : vector<8x64xf32>
    %107 = arith.addf %105, %106 : vector<8x64xf32>
    %108 = arith.mulf %25, %4 : vector<8x64xf32>
    %109 = arith.mulf %28, %7 : vector<8x64xf32>
    %110 = arith.addf %108, %109 : vector<8x64xf32>
    %111 = arith.mulf %31, %10 : vector<8x64xf32>
    %112 = arith.addf %110, %111 : vector<8x64xf32>
    %113 = arith.maximumf %107, %112 : vector<8x64xf32>
    %114 = arith.mulf %31, %7 : vector<8x64xf32>
    %115 = arith.mulf %34, %10 : vector<8x64xf32>
    %116 = arith.addf %114, %115 : vector<8x64xf32>
    %117 = arith.mulf %28, %4 : vector<8x64xf32>
    %118 = arith.addf %116, %117 : vector<8x64xf32>
    %119 = arith.mulf %31, %4 : vector<8x64xf32>
    %120 = arith.mulf %34, %7 : vector<8x64xf32>
    %121 = arith.addf %119, %120 : vector<8x64xf32>
    %122 = arith.mulf %37, %10 : vector<8x64xf32>
    %123 = arith.addf %121, %122 : vector<8x64xf32>
    %124 = arith.maximumf %118, %123 : vector<8x64xf32>
    %125 = arith.mulf %37, %7 : vector<8x64xf32>
    %126 = arith.mulf %40, %10 : vector<8x64xf32>
    %127 = arith.addf %125, %126 : vector<8x64xf32>
    %128 = arith.mulf %34, %4 : vector<8x64xf32>
    %129 = arith.addf %127, %128 : vector<8x64xf32>
    %130 = arith.mulf %37, %4 : vector<8x64xf32>
    %131 = arith.mulf %40, %7 : vector<8x64xf32>
    %132 = arith.addf %130, %131 : vector<8x64xf32>
    %133 = arith.mulf %43, %10 : vector<8x64xf32>
    %134 = arith.addf %132, %133 : vector<8x64xf32>
    %135 = arith.maximumf %129, %134 : vector<8x64xf32>
    %136 = arith.mulf %43, %7 : vector<8x64xf32>
    %137 = arith.mulf %46, %10 : vector<8x64xf32>
    %138 = arith.addf %136, %137 : vector<8x64xf32>
    %139 = arith.mulf %40, %4 : vector<8x64xf32>
    %140 = arith.addf %138, %139 : vector<8x64xf32>
    %141 = arith.mulf %43, %4 : vector<8x64xf32>
    %142 = arith.mulf %46, %7 : vector<8x64xf32>
    %143 = arith.addf %141, %142 : vector<8x64xf32>
    %144 = arith.mulf %49, %10 : vector<8x64xf32>
    %145 = arith.addf %143, %144 : vector<8x64xf32>
    %146 = arith.maximumf %140, %145 : vector<8x64xf32>
    %147 = arith.mulf %49, %7 : vector<8x64xf32>
    %148 = arith.mulf %52, %10 : vector<8x64xf32>
    %149 = arith.addf %147, %148 : vector<8x64xf32>
    %150 = arith.mulf %46, %4 : vector<8x64xf32>
    %151 = arith.addf %149, %150 : vector<8x64xf32>
    %152 = arith.mulf %49, %4 : vector<8x64xf32>
    %153 = arith.mulf %52, %7 : vector<8x64xf32>
    %154 = arith.addf %152, %153 : vector<8x64xf32>
    %155 = arith.mulf %55, %10 : vector<8x64xf32>
    %156 = arith.addf %154, %155 : vector<8x64xf32>
    %157 = arith.maximumf %151, %156 : vector<8x64xf32>
    %158 = arith.mulf %55, %7 : vector<8x64xf32>
    %159 = arith.mulf %58, %10 : vector<8x64xf32>
    %160 = arith.addf %158, %159 : vector<8x64xf32>
    %161 = arith.mulf %52, %4 : vector<8x64xf32>
    %162 = arith.addf %160, %161 : vector<8x64xf32>
    %163 = arith.mulf %55, %4 : vector<8x64xf32>
    %164 = arith.mulf %58, %7 : vector<8x64xf32>
    %165 = arith.addf %163, %164 : vector<8x64xf32>
    %166 = arith.mulf %61, %10 : vector<8x64xf32>
    %167 = arith.addf %165, %166 : vector<8x64xf32>
    %168 = arith.maximumf %162, %167 : vector<8x64xf32>
    %169 = arith.mulf %61, %7 : vector<8x64xf32>
    %170 = arith.mulf %64, %10 : vector<8x64xf32>
    %171 = arith.addf %169, %170 : vector<8x64xf32>
    %172 = arith.mulf %58, %4 : vector<8x64xf32>
    %173 = arith.addf %171, %172 : vector<8x64xf32>
    %174 = arith.mulf %61, %4 : vector<8x64xf32>
    %175 = arith.mulf %64, %7 : vector<8x64xf32>
    %176 = arith.addf %174, %175 : vector<8x64xf32>
    %177 = arith.mulf %67, %10 : vector<8x64xf32>
    %178 = arith.addf %176, %177 : vector<8x64xf32>
    %179 = arith.maximumf %173, %178 : vector<8x64xf32>
    %180 = arith.mulf %67, %7 : vector<8x64xf32>
    %181 = arith.mulf %70, %10 : vector<8x64xf32>
    %182 = arith.addf %180, %181 : vector<8x64xf32>
    %183 = arith.mulf %64, %4 : vector<8x64xf32>
    %184 = arith.addf %182, %183 : vector<8x64xf32>
    %185 = arith.mulf %67, %4 : vector<8x64xf32>
    %186 = arith.mulf %70, %7 : vector<8x64xf32>
    %187 = arith.addf %185, %186 : vector<8x64xf32>
    %188 = arith.mulf %73, %10 : vector<8x64xf32>
    %189 = arith.addf %187, %188 : vector<8x64xf32>
    %190 = arith.maximumf %184, %189 : vector<8x64xf32>
    %191 = arith.mulf %73, %7 : vector<8x64xf32>
    %192 = arith.mulf %76, %10 : vector<8x64xf32>
    %193 = arith.addf %191, %192 : vector<8x64xf32>
    %194 = arith.mulf %70, %4 : vector<8x64xf32>
    %195 = arith.addf %193, %194 : vector<8x64xf32>
    %196 = arith.mulf %73, %4 : vector<8x64xf32>
    %197 = arith.mulf %76, %7 : vector<8x64xf32>
    %198 = arith.addf %196, %197 : vector<8x64xf32>
    %199 = arith.mulf %79, %10 : vector<8x64xf32>
    %200 = arith.addf %198, %199 : vector<8x64xf32>
    %201 = arith.maximumf %195, %200 : vector<8x64xf32>
    %202 = arith.mulf %79, %7 : vector<8x64xf32>
    %203 = arith.mulf %82, %10 : vector<8x64xf32>
    %204 = arith.addf %202, %203 : vector<8x64xf32>
    %205 = arith.mulf %76, %4 : vector<8x64xf32>
    %206 = arith.addf %204, %205 : vector<8x64xf32>
    %207 = arith.mulf %79, %4 : vector<8x64xf32>
    %208 = arith.mulf %82, %7 : vector<8x64xf32>
    %209 = arith.addf %207, %208 : vector<8x64xf32>
    %210 = arith.maximumf %206, %209 : vector<8x64xf32>
    %211 = tpu.concatenate %91, %102, %113, %124, %135, %146, %157, %168, %179, %190, %201, %210 in 0 : vector<8x64xf32>, vector<8x64xf32>, vector<8x64xf32>, vector<8x64xf32>, vector<8x64xf32>, vector<8x64xf32>, vector<8x64xf32>, vector<8x64xf32>, vector<8x64xf32>, vector<8x64xf32>, vector<8x64xf32>, vector<8x64xf32> -> vector<96x64xf32>
    %c0_3 = arith.constant 0 : index
    %c0_4 = arith.constant 0 : index
    %212 = vector.load %arg3[%c0_3, %c0_4] : memref<1x64xf32, #tpu.memory_space<vmem>>, vector<1x64xf32>
    %213 = vector.broadcast %212 : vector<1x64xf32> to vector<96x64xf32>
    %214 = arith.addf %211, %213 : vector<96x64xf32>
    %c0_5 = arith.constant 0 : index
    %c0_6 = arith.constant 0 : index
    %215 = vector.load %arg4[%c0_5, %c0_6] : memref<192x64xf32, #tpu.memory_space<vmem>>, vector<192x64xf32>
    %216 = vector.extract_strided_slice %215 {offsets = [0, 0], sizes = [64, 64], strides = [1, 1]} : vector<192x64xf32> to vector<64x64xf32>
    %cst = arith.constant dense<0.000000e+00> : vector<96x64xf32>
    %217 = tpu.matmul %214, %216, %cst {dimension_numbers = #tpu.dot_dimension_numbers<[1], [0], [0], [1], [0, 0, 1, 1], [], []>} : vector<96x64xf32>, vector<64x64xf32>, vector<96x64xf32> -> vector<96x64xf32>
    %218 = vector.extract_strided_slice %215 {offsets = [64, 0], sizes = [64, 64], strides = [1, 1]} : vector<192x64xf32> to vector<64x64xf32>
    %cst_7 = arith.constant dense<0.000000e+00> : vector<96x64xf32>
    %219 = tpu.matmul %214, %218, %cst_7 {dimension_numbers = #tpu.dot_dimension_numbers<[1], [0], [0], [1], [0, 0, 1, 1], [], []>} : vector<96x64xf32>, vector<64x64xf32>, vector<96x64xf32> -> vector<96x64xf32>
    %220 = vector.extract_strided_slice %215 {offsets = [128, 0], sizes = [64, 64], strides = [1, 1]} : vector<192x64xf32> to vector<64x64xf32>
    %cst_8 = arith.constant dense<0.000000e+00> : vector<96x64xf32>
    %221 = tpu.matmul %214, %220, %cst_8 {dimension_numbers = #tpu.dot_dimension_numbers<[1], [0], [0], [1], [0, 0, 1, 1], [], []>} : vector<96x64xf32>, vector<64x64xf32>, vector<96x64xf32> -> vector<96x64xf32>
    %cst_9 = arith.constant 0.000000e+00 : f32
    %222 = vector.broadcast %cst_9 : f32 to vector<8x64xf32>
    %223 = vector.extract_strided_slice %217 {offsets = [0, 0], sizes = [88, 64], strides = [1, 1]} : vector<96x64xf32> to vector<88x64xf32>
    %224 = tpu.concatenate %222, %223 in 0 : vector<8x64xf32>, vector<88x64xf32> -> vector<96x64xf32>
    %225 = arith.addf %219, %224 : vector<96x64xf32>
    %226 = vector.extract_strided_slice %221 {offsets = [8, 0], sizes = [88, 64], strides = [1, 1]} : vector<96x64xf32> to vector<88x64xf32>
    %227 = tpu.concatenate %226, %222 in 0 : vector<88x64xf32>, vector<8x64xf32> -> vector<96x64xf32>
    %228 = arith.addf %225, %227 : vector<96x64xf32>
    %c0_10 = arith.constant 0 : index
    %c0_11 = arith.constant 0 : index
    %229 = vector.load %arg5[%c0_10, %c0_11] : memref<1x64xf32, #tpu.memory_space<vmem>>, vector<1x64xf32>
    %230 = vector.broadcast %229 : vector<1x64xf32> to vector<96x64xf32>
    %231 = arith.addf %228, %230 : vector<96x64xf32>
    %232 = vector.extract_strided_slice %231 {offsets = [0, 0], sizes = [8, 64], strides = [1, 1]} : vector<96x64xf32> to vector<8x64xf32>
    %233 = vector.extract_strided_slice %231 {offsets = [8, 0], sizes = [8, 64], strides = [1, 1]} : vector<96x64xf32> to vector<8x64xf32>
    %234 = arith.maximumf %232, %233 : vector<8x64xf32>
    %235 = vector.extract_strided_slice %231 {offsets = [16, 0], sizes = [8, 64], strides = [1, 1]} : vector<96x64xf32> to vector<8x64xf32>
    %236 = vector.extract_strided_slice %231 {offsets = [24, 0], sizes = [8, 64], strides = [1, 1]} : vector<96x64xf32> to vector<8x64xf32>
    %237 = arith.maximumf %235, %236 : vector<8x64xf32>
    %238 = vector.extract_strided_slice %231 {offsets = [32, 0], sizes = [8, 64], strides = [1, 1]} : vector<96x64xf32> to vector<8x64xf32>
    %239 = vector.extract_strided_slice %231 {offsets = [40, 0], sizes = [8, 64], strides = [1, 1]} : vector<96x64xf32> to vector<8x64xf32>
    %240 = arith.maximumf %238, %239 : vector<8x64xf32>
    %241 = vector.extract_strided_slice %231 {offsets = [48, 0], sizes = [8, 64], strides = [1, 1]} : vector<96x64xf32> to vector<8x64xf32>
    %242 = vector.extract_strided_slice %231 {offsets = [56, 0], sizes = [8, 64], strides = [1, 1]} : vector<96x64xf32> to vector<8x64xf32>
    %243 = arith.maximumf %241, %242 : vector<8x64xf32>
    %244 = vector.extract_strided_slice %231 {offsets = [64, 0], sizes = [8, 64], strides = [1, 1]} : vector<96x64xf32> to vector<8x64xf32>
    %245 = vector.extract_strided_slice %231 {offsets = [72, 0], sizes = [8, 64], strides = [1, 1]} : vector<96x64xf32> to vector<8x64xf32>
    %246 = arith.maximumf %244, %245 : vector<8x64xf32>
    %247 = vector.extract_strided_slice %231 {offsets = [80, 0], sizes = [8, 64], strides = [1, 1]} : vector<96x64xf32> to vector<8x64xf32>
    %248 = vector.extract_strided_slice %231 {offsets = [88, 0], sizes = [8, 64], strides = [1, 1]} : vector<96x64xf32> to vector<8x64xf32>
    %249 = arith.maximumf %247, %248 : vector<8x64xf32>
    %250 = tpu.concatenate %234, %237, %240, %243, %246, %249 in 0 : vector<8x64xf32>, vector<8x64xf32>, vector<8x64xf32>, vector<8x64xf32>, vector<8x64xf32>, vector<8x64xf32> -> vector<48x64xf32>
    %c0_12 = arith.constant 0 : index
    %c0_13 = arith.constant 0 : index
    %251 = vector.load %arg6[%c0_12, %c0_13] : memref<192x128xf32, #tpu.memory_space<vmem>>, vector<192x128xf32>
    %252 = vector.extract_strided_slice %251 {offsets = [0, 0], sizes = [64, 128], strides = [1, 1]} : vector<192x128xf32> to vector<64x128xf32>
    %cst_14 = arith.constant dense<0.000000e+00> : vector<48x128xf32>
    %253 = tpu.matmul %250, %252, %cst_14 {dimension_numbers = #tpu.dot_dimension_numbers<[1], [0], [0], [1], [0, 0, 1, 1], [], []>} : vector<48x64xf32>, vector<64x128xf32>, vector<48x128xf32> -> vector<48x128xf32>
    %254 = vector.extract_strided_slice %251 {offsets = [64, 0], sizes = [64, 128], strides = [1, 1]} : vector<192x128xf32> to vector<64x128xf32>
    %cst_15 = arith.constant dense<0.000000e+00> : vector<48x128xf32>
    %255 = tpu.matmul %250, %254, %cst_15 {dimension_numbers = #tpu.dot_dimension_numbers<[1], [0], [0], [1], [0, 0, 1, 1], [], []>} : vector<48x64xf32>, vector<64x128xf32>, vector<48x128xf32> -> vector<48x128xf32>
    %256 = vector.extract_strided_slice %251 {offsets = [128, 0], sizes = [64, 128], strides = [1, 1]} : vector<192x128xf32> to vector<64x128xf32>
    %cst_16 = arith.constant dense<0.000000e+00> : vector<48x128xf32>
    %257 = tpu.matmul %250, %256, %cst_16 {dimension_numbers = #tpu.dot_dimension_numbers<[1], [0], [0], [1], [0, 0, 1, 1], [], []>} : vector<48x64xf32>, vector<64x128xf32>, vector<48x128xf32> -> vector<48x128xf32>
    %cst_17 = arith.constant 0.000000e+00 : f32
    %258 = vector.broadcast %cst_17 : f32 to vector<8x128xf32>
    %259 = vector.extract_strided_slice %253 {offsets = [0, 0], sizes = [40, 128], strides = [1, 1]} : vector<48x128xf32> to vector<40x128xf32>
    %260 = tpu.concatenate %258, %259 in 0 : vector<8x128xf32>, vector<40x128xf32> -> vector<48x128xf32>
    %261 = arith.addf %255, %260 : vector<48x128xf32>
    %262 = vector.extract_strided_slice %257 {offsets = [8, 0], sizes = [40, 128], strides = [1, 1]} : vector<48x128xf32> to vector<40x128xf32>
    %263 = tpu.concatenate %262, %258 in 0 : vector<40x128xf32>, vector<8x128xf32> -> vector<48x128xf32>
    %264 = arith.addf %261, %263 : vector<48x128xf32>
    %c0_18 = arith.constant 0 : index
    %c0_19 = arith.constant 0 : index
    %265 = vector.load %arg7[%c0_18, %c0_19] : memref<1x128xf32, #tpu.memory_space<vmem>>, vector<1x128xf32>
    %266 = vector.broadcast %265 : vector<1x128xf32> to vector<48x128xf32>
    %267 = arith.addf %264, %266 : vector<48x128xf32>
    %268 = vector.extract_strided_slice %267 {offsets = [0, 0], sizes = [8, 128], strides = [1, 1]} : vector<48x128xf32> to vector<8x128xf32>
    %269 = vector.extract_strided_slice %267 {offsets = [8, 0], sizes = [8, 128], strides = [1, 1]} : vector<48x128xf32> to vector<8x128xf32>
    %270 = arith.maximumf %268, %269 : vector<8x128xf32>
    %271 = vector.extract_strided_slice %267 {offsets = [16, 0], sizes = [8, 128], strides = [1, 1]} : vector<48x128xf32> to vector<8x128xf32>
    %272 = vector.extract_strided_slice %267 {offsets = [24, 0], sizes = [8, 128], strides = [1, 1]} : vector<48x128xf32> to vector<8x128xf32>
    %273 = arith.maximumf %271, %272 : vector<8x128xf32>
    %274 = vector.extract_strided_slice %267 {offsets = [32, 0], sizes = [8, 128], strides = [1, 1]} : vector<48x128xf32> to vector<8x128xf32>
    %275 = vector.extract_strided_slice %267 {offsets = [40, 0], sizes = [8, 128], strides = [1, 1]} : vector<48x128xf32> to vector<8x128xf32>
    %276 = arith.maximumf %274, %275 : vector<8x128xf32>
    %277 = tpu.concatenate %270, %273, %276 in 0 : vector<8x128xf32>, vector<8x128xf32>, vector<8x128xf32> -> vector<24x128xf32>
    %278 = vector.extract_strided_slice %277 {offsets = [0, 0], sizes = [8, 128], strides = [1, 1]} : vector<24x128xf32> to vector<8x128xf32>
    %279 = vector.extract_strided_slice %277 {offsets = [8, 0], sizes = [8, 128], strides = [1, 1]} : vector<24x128xf32> to vector<8x128xf32>
    %280 = vector.extract_strided_slice %277 {offsets = [16, 0], sizes = [8, 128], strides = [1, 1]} : vector<24x128xf32> to vector<8x128xf32>
    %281 = tpu.concatenate %278, %279, %280 in 1 : vector<8x128xf32>, vector<8x128xf32>, vector<8x128xf32> -> vector<8x384xf32>
    %c0_20 = arith.constant 0 : index
    %c0_21 = arith.constant 0 : index
    %282 = vector.load %arg8[%c0_20, %c0_21] : memref<384x512xf32, #tpu.memory_space<vmem>>, vector<384x512xf32>
    %cst_22 = arith.constant dense<0.000000e+00> : vector<8x512xf32>
    %283 = tpu.matmul %281, %282, %cst_22 {dimension_numbers = #tpu.dot_dimension_numbers<[1], [0], [0], [1], [0, 0, 1, 1], [], []>} : vector<8x384xf32>, vector<384x512xf32>, vector<8x512xf32> -> vector<8x512xf32>
    %c0_23 = arith.constant 0 : index
    %c0_24 = arith.constant 0 : index
    %284 = vector.load %arg9[%c0_23, %c0_24] : memref<1x512xf32, #tpu.memory_space<vmem>>, vector<1x512xf32>
    %285 = vector.broadcast %284 : vector<1x512xf32> to vector<8x512xf32>
    %286 = arith.addf %283, %285 : vector<8x512xf32>
    %cst_25 = arith.constant 0.000000e+00 : f32
    %287 = vector.broadcast %cst_25 : f32 to vector<8x512xf32>
    %288 = arith.maximumf %286, %287 : vector<8x512xf32>
    %c0_26 = arith.constant 0 : index
    %c0_27 = arith.constant 0 : index
    %289 = vector.load %arg10[%c0_26, %c0_27] : memref<512x128xf32, #tpu.memory_space<vmem>>, vector<512x128xf32>
    %cst_28 = arith.constant dense<0.000000e+00> : vector<8x128xf32>
    %290 = tpu.matmul %288, %289, %cst_28 {dimension_numbers = #tpu.dot_dimension_numbers<[1], [0], [0], [1], [0, 0, 1, 1], [], []>} : vector<8x512xf32>, vector<512x128xf32>, vector<8x128xf32> -> vector<8x128xf32>
    %c0_29 = arith.constant 0 : index
    %c0_30 = arith.constant 0 : index
    %291 = vector.load %arg11[%c0_29, %c0_30] : memref<1x128xf32, #tpu.memory_space<vmem>>, vector<1x128xf32>
    %292 = vector.broadcast %291 : vector<1x128xf32> to vector<8x128xf32>
    %293 = arith.addf %290, %292 : vector<8x128xf32>
    %cst_31 = arith.constant 0.000000e+00 : f32
    %294 = vector.broadcast %cst_31 : f32 to vector<8x128xf32>
    %295 = arith.maximumf %293, %294 : vector<8x128xf32>
    %c0_32 = arith.constant 0 : index
    %c0_33 = arith.constant 0 : index
    %296 = vector.load %arg12[%c0_32, %c0_33] : memref<1x128xf32, #tpu.memory_space<vmem>>, vector<1x128xf32>
    %cst_34 = arith.constant dense<0.000000e+00> : vector<1x8xf32>
    %297 = tpu.matmul %296, %295, %cst_34 {dimension_numbers = #tpu.dot_dimension_numbers<[1], [1], [0], [0], [0, 0, 1, 0], [], []>} : vector<1x128xf32>, vector<8x128xf32>, vector<1x8xf32> -> vector<1x8xf32>
    %c0_35 = arith.constant 0 : index
    %c0_36 = arith.constant 0 : index
    %298 = vector.load %arg13[%c0_35, %c0_36] : memref<1x1xf32, #tpu.memory_space<vmem>>, vector<1x1xf32>
    %299 = vector.broadcast %298 : vector<1x1xf32> to vector<1x8xf32>
    %300 = arith.addf %297, %299 : vector<1x8xf32>
    %cst_37 = arith.constant 0.000000e+00 : f32
    %301 = vector.broadcast %cst_37 : f32 to vector<1x8xf32>
    %302 = arith.subf %301, %300 : vector<1x8xf32>
    %303 = math.exp %302 : vector<1x8xf32>
    %cst_38 = arith.constant 1.000000e+00 : f32
    %304 = vector.broadcast %cst_38 : f32 to vector<1x8xf32>
    %305 = arith.addf %304, %303 : vector<1x8xf32>
    %306 = tpu.reciprocal %305 : vector<1x8xf32> -> vector<1x8xf32>
    %c0_39 = arith.constant 0 : index
    %c0_40 = arith.constant 0 : index
    %c0_41 = arith.constant 0 : index
    %307 = vector.load %arg14[%c0_39, %c0_40, %c0_41] : memref<1x1x8xf32, #tpu.memory_space<vmem>>, vector<1x1x8xf32>
    %308 = vector.shape_cast %307 : vector<1x1x8xf32> to vector<1x8xf32>
    %309 = vector.shape_cast %306 : vector<1x8xf32> to vector<1x1x8xf32>
    tpu.vector_store %arg14[%c0_39, %c0_40, %c0_41], %309 {strides = array<i32>} : memref<1x1x8xf32, #tpu.memory_space<vmem>>, vector<1x1x8xf32>,
    return
  }
  func.func @transform_0(%arg0: i32) -> (i32, i32) {
    %c0_i32 = arith.constant 0 : i32
    %c0_i32_0 = arith.constant 0 : i32
    return %arg0, %c0_i32 : i32, i32
  }
  func.func @transform_1(%arg0: i32) -> (i32, i32) {
    %c0_i32 = arith.constant 0 : i32
    %c0_i32_0 = arith.constant 0 : i32
    %c0_i32_1 = arith.constant 0 : i32
    return %c0_i32, %c0_i32_0 : i32, i32
  }
  func.func @transform_2(%arg0: i32) -> (i32, i32) {
    %c0_i32 = arith.constant 0 : i32
    %c0_i32_0 = arith.constant 0 : i32
    %c0_i32_1 = arith.constant 0 : i32
    return %c0_i32, %c0_i32_0 : i32, i32
  }
  func.func @transform_3(%arg0: i32) -> (i32, i32) {
    %c0_i32 = arith.constant 0 : i32
    %c0_i32_0 = arith.constant 0 : i32
    %c0_i32_1 = arith.constant 0 : i32
    return %c0_i32, %c0_i32_0 : i32, i32
  }
  func.func @transform_4(%arg0: i32) -> (i32, i32) {
    %c0_i32 = arith.constant 0 : i32
    %c0_i32_0 = arith.constant 0 : i32
    %c0_i32_1 = arith.constant 0 : i32
    return %c0_i32, %c0_i32_0 : i32, i32
  }
  func.func @transform_5(%arg0: i32) -> (i32, i32) {
    %c0_i32 = arith.constant 0 : i32
    %c0_i32_0 = arith.constant 0 : i32
    %c0_i32_1 = arith.constant 0 : i32
    return %c0_i32, %c0_i32_0 : i32, i32
  }
  func.func @transform_6(%arg0: i32) -> (i32, i32) {
    %c0_i32 = arith.constant 0 : i32
    %c0_i32_0 = arith.constant 0 : i32
    %c0_i32_1 = arith.constant 0 : i32
    return %c0_i32, %c0_i32_0 : i32, i32
  }
  func.func @transform_7(%arg0: i32) -> (i32, i32) {
    %c0_i32 = arith.constant 0 : i32
    %c0_i32_0 = arith.constant 0 : i32
    %c0_i32_1 = arith.constant 0 : i32
    return %c0_i32, %c0_i32_0 : i32, i32
  }
  func.func @transform_8(%arg0: i32) -> (i32, i32) {
    %c0_i32 = arith.constant 0 : i32
    %c0_i32_0 = arith.constant 0 : i32
    %c0_i32_1 = arith.constant 0 : i32
    return %c0_i32, %c0_i32_0 : i32, i32
  }
  func.func @transform_9(%arg0: i32) -> (i32, i32) {
    %c0_i32 = arith.constant 0 : i32
    %c0_i32_0 = arith.constant 0 : i32
    %c0_i32_1 = arith.constant 0 : i32
    return %c0_i32, %c0_i32_0 : i32, i32
  }
  func.func @transform_10(%arg0: i32) -> (i32, i32) {
    %c0_i32 = arith.constant 0 : i32
    %c0_i32_0 = arith.constant 0 : i32
    %c0_i32_1 = arith.constant 0 : i32
    return %c0_i32, %c0_i32_0 : i32, i32
  }
  func.func @transform_11(%arg0: i32) -> (i32, i32) {
    %c0_i32 = arith.constant 0 : i32
    %c0_i32_0 = arith.constant 0 : i32
    %c0_i32_1 = arith.constant 0 : i32
    return %c0_i32, %c0_i32_0 : i32, i32
  }
  func.func @transform_12(%arg0: i32) -> (i32, i32) {
    %c0_i32 = arith.constant 0 : i32
    %c0_i32_0 = arith.constant 0 : i32
    %c0_i32_1 = arith.constant 0 : i32
    return %c0_i32, %c0_i32_0 : i32, i32
  }
  func.func @transform_13(%arg0: i32) -> (i32, i32, i32) {
    %c0_i32 = arith.constant 0 : i32
    %c0_i32_0 = arith.constant 0 : i32
    %c0_i32_1 = arith.constant 0 : i32
    return %arg0, %c0_i32, %c0_i32_0 : i32, i32, i32
  }
}

</mosaic_0001>

<llo_original>
// kernel: tpu_custom_call.1
$region0: #{tpu_custom_call.1}
  #allocation0 [shape = 'u32[]', space=smem, size = 0x4, offset = 0x4, fixed_abs, tag = 'smem constant byte address 0x4 - core index']
  #allocation1 [shape = 'u32[72,128]{1,0:T(1,128)}', space=vmem, size = 0x9000, scoped, tag = 'internal scratch']
  #allocation2 [shape = 'f32[1,1]{1,0:T(1,128)S(1)}', space=vmem, size = 0x200, scoped, tag = 'scoped memory for tpu_custom_call.1']
  %s0 = inlined_call_operand.vmem [shape: f32[8,24], index: 0, kind: input, shape index: {}]
  %s1 = inlined_call_operand.vmem [shape: f32[3,64], index: 1, kind: input, shape index: {}]
  %s2 = inlined_call_operand.vmem [shape: f32[1,64], index: 2, kind: input, shape index: {}]
  %s3 = inlined_call_operand.vmem [shape: f32[192,64], index: 3, kind: input, shape index: {}]
  %s4 = inlined_call_operand.vmem [shape: f32[1,64], index: 4, kind: input, shape index: {}]
  %s5 = inlined_call_operand.vmem [shape: f32[192,128], index: 5, kind: input, shape index: {}]
  %s6 = inlined_call_operand.vmem [shape: f32[1,128], index: 6, kind: input, shape index: {}]
  %s7 = inlined_call_operand.hbm [shape: f32[384,512], index: 7, kind: input, shape index: {}]
  %s8 = inlined_call_operand.vmem [shape: f32[1,512], index: 8, kind: input, shape index: {}]
  %s9 = inlined_call_operand.hbm [shape: f32[512,128], index: 9, kind: input, shape index: {}]
  %s10 = inlined_call_operand.vmem [shape: f32[1,128], index: 10, kind: input, shape index: {}]
  %s11 = inlined_call_operand.vmem [shape: f32[1,128], index: 11, kind: input, shape index: {}]
  %s12 = inlined_call_operand.<no memory space> [shape: f32[1,1], index: 12, kind: input, shape index: {}]
  %s13 = inlined_call_operand.hbm [shape: f32[1,1,8], index: 13, kind: output, shape index: {}]
  %s14 = sld [smem:[#allocation0]]
  $region70: #{tpu_custom_call.1} parent=0
    _
  %s16 = ssub.s32 1, %s14
  %s17 = scalar_select 0, %s16, %s14
  %v18 = vstv %s12
  %19 = vst [vmem:[#allocation2] sm:$0x1] %v18
  $region1: #{tpu_custom_call.1} parent=0
    #allocation3 [shape = 'u8[786432]{0}', space=vmem, size = 0xc0000, scoped, tag = 'input window, operand 7, single buffered']
    #allocation4 [shape = 's32[1]{0}', space=sflag, size = 0x4, scoped, tag = 'scoped memory for tpu_custom_call.1']
    #allocation5 [shape = 's32[1]{0}', space=sflag, size = 0x4, scoped, tag = 'scoped memory for tpu_custom_call.1']
    #allocation6 [shape = 'u8[262144]{0}', space=vmem, size = 0x40000, scoped, tag = 'input window, operand 9, single buffered']
    #allocation7 [shape = 's32[1]{0}', space=sflag, size = 0x4, scoped, tag = 'scoped memory for tpu_custom_call.1']
    #allocation8 [shape = 'u8[512]{0}', space=vmem, size = 0x400, scoped, tag = 'output window, operand 0, single buffered']
    %20 = vsyncpa [#allocation4], 0
    %21 = vsyncpa [#allocation7], 0
    %22 = vsyncpa [#allocation5], 0
    // Predicated region
    $region2: #{tpu_custom_call.1} parent=1 // pred_check
      _
    $region3: #{tpu_custom_call.1} parent=1 // pred_check_branch
      %24 = sbr.rel (0) target = $region5
    $region4: #{tpu_custom_call.1} parent=1 // pred_region
      _
    $region5: #{tpu_custom_call.1} parent=1 // pred_fallthru
      _
    // Predicated region
    $region6: #{tpu_custom_call.1} parent=1 // pred_check
      _
    $region7: #{tpu_custom_call.1} parent=1 // pred_check_branch
      %26 = sbr.rel (0) target = $region9
    $region8: #{tpu_custom_call.1} parent=1 // pred_region
      _
    $region9: #{tpu_custom_call.1} parent=1 // pred_fallthru
      _
    // Predicated region
    $region10: #{tpu_custom_call.1} parent=1 // pred_check
      _
    $region11: #{tpu_custom_call.1} parent=1 // pred_check_branch
      %28 = sbr.rel (0) target = $region13
    $region12: #{tpu_custom_call.1} parent=1 // pred_region
      _
    $region13: #{tpu_custom_call.1} parent=1 // pred_fallthru
      _
    // Predicated region
    $region14: #{tpu_custom_call.1} parent=1 // pred_check
      _
    $region15: #{tpu_custom_call.1} parent=1 // pred_check_branch
      %30 = sbr.rel (0) target = $region17
    $region16: #{tpu_custom_call.1} parent=1 // pred_region
      _
    $region17: #{tpu_custom_call.1} parent=1 // pred_fallthru
      _
    // Predicated region
    $region18: #{tpu_custom_call.1} parent=1 // pred_check
      _
    $region19: #{tpu_custom_call.1} parent=1 // pred_check_branch
      %32 = sbr.rel (0) target = $region21
    $region20: #{tpu_custom_call.1} parent=1 // pred_region
      _
    $region21: #{tpu_custom_call.1} parent=1 // pred_fallthru
      _
    // Predicated region
    $region22: #{tpu_custom_call.1} parent=1 // pred_check
      _
    $region23: #{tpu_custom_call.1} parent=1 // pred_check_branch
      %34 = sbr.rel (0) target = $region25
    $region24: #{tpu_custom_call.1} parent=1 // pred_region
      _
    $region25: #{tpu_custom_call.1} parent=1 // pred_fallthru
      _
    // Predicated region
    $region26: #{tpu_custom_call.1} parent=1 // pred_check
      _
    $region27: #{tpu_custom_call.1} parent=1 // pred_check_branch
      %36 = sbr.rel (0) target = $region29
    $region28: #{tpu_custom_call.1} parent=1 // pred_region
      _
    $region29: #{tpu_custom_call.1} parent=1 // pred_fallthru
      _
    // Predicated region
    $region30: #{tpu_custom_call.1} parent=1 // pred_check
      _
    $region31: #{tpu_custom_call.1} parent=1 // pred_check_branch
      %38 = sbr.rel (0) target = $region33
    $region32: #{tpu_custom_call.1} parent=1 // pred_region
      %40 = vsyncadd [#allocation4], 0
      %s41 = sshll.u32 %s7, 4
      %s42 = int_to_ptr.hbm [resolvable:$true] %s41
      %s43 = sshll.u32 [#allocation3], 4
      %s44 = int_to_ptr.vmem [resolvable:$true] %s43
      %49 = dma.hbm_to_vmem [thread:$0]  %s42, 24576, %s44, [#allocation4], 512, 512, 32
    $region33: #{tpu_custom_call.1} parent=1 // pred_fallthru
      _
    // Predicated region
    $region34: #{tpu_custom_call.1} parent=1 // pred_check
      _
    $region35: #{tpu_custom_call.1} parent=1 // pred_check_branch
      %51 = sbr.rel (0) target = $region37
    $region36: #{tpu_custom_call.1} parent=1 // pred_region
      _
    $region37: #{tpu_custom_call.1} parent=1 // pred_fallthru
      _
    // Predicated region
    $region38: #{tpu_custom_call.1} parent=1 // pred_check
      _
    $region39: #{tpu_custom_call.1} parent=1 // pred_check_branch
      %53 = sbr.rel (0) target = $region41
    $region40: #{tpu_custom_call.1} parent=1 // pred_region
      %55 = vsyncadd [#allocation7], 0
      %s56 = sshll.u32 %s9, 4
      %s57 = int_to_ptr.hbm [resolvable:$true] %s56
      %s58 = sshll.u32 [#allocation6], 4
      %s59 = int_to_ptr.vmem [resolvable:$true] %s58
      %64 = dma.hbm_to_vmem [thread:$0]  %s57, 8192, %s59, [#allocation7], 128, 128, 8
    $region41: #{tpu_custom_call.1} parent=1 // pred_fallthru
      _
    // Predicated region
    $region42: #{tpu_custom_call.1} parent=1 // pred_check
      _
    $region43: #{tpu_custom_call.1} parent=1 // pred_check_branch
      %66 = sbr.rel (0) target = $region45
    $region44: #{tpu_custom_call.1} parent=1 // pred_region
      _
    $region45: #{tpu_custom_call.1} parent=1 // pred_fallthru
      _
    // Predicated region
    $region46: #{tpu_custom_call.1} parent=1 // pred_check
      _
    $region47: #{tpu_custom_call.1} parent=1 // pred_check_branch
      %68 = sbr.rel (0) target = $region49
    $region48: #{tpu_custom_call.1} parent=1 // pred_region
      _
    $region49: #{tpu_custom_call.1} parent=1 // pred_fallthru
      _
    // Predicated region
    $region50: #{tpu_custom_call.1} parent=1 // pred_check
      _
    $region51: #{tpu_custom_call.1} parent=1 // pred_check_branch
      %70 = sbr.rel (0) target = $region53
    $region52: #{tpu_custom_call.1} parent=1 // pred_region
      _
    $region53: #{tpu_custom_call.1} parent=1 // pred_fallthru
      _
    // Predicated region
    $region54: #{tpu_custom_call.1} parent=1 // pred_check
      _
    $region55: #{tpu_custom_call.1} parent=1 // pred_check_branch
      %72 = sbr.rel (0) target = $region57
    $region56: #{tpu_custom_call.1} parent=1 // pred_region
      %74 = dma.done [#allocation4], 24576
    $region57: #{tpu_custom_call.1} parent=1 // pred_fallthru
      _
    // Predicated region
    $region58: #{tpu_custom_call.1} parent=1 // pred_check
      _
    $region59: #{tpu_custom_call.1} parent=1 // pred_check_branch
      %76 = sbr.rel (0) target = $region61
    $region60: #{tpu_custom_call.1} parent=1 // pred_region
      %78 = dma.done [#allocation7], 8192
    $region61: #{tpu_custom_call.1} parent=1 // pred_fallthru
      _
    %v79 = vld [vmem:[%s0] sm:$0xff]
    %v80 = vld [vmem:[%s1] sm:$0x7]
    %v81 = vperm.slane %v80, 0
    %v82 = vperm.slane %v80, 1
    %v83 = vperm.slane %v80, 2
    %85 = vset.pattern.permute.xlu0 0
    %86 = vperm.xlu0 %85, %v79
    %v87 = vpop.permute.xlu0 %86
    %89 = vset.pattern.permute.xlu0 1
    %90 = vperm.xlu0 %89, %v79
    %v91 = vpop.permute.xlu0 %90
    %93 = vset.pattern.permute.xlu0 2
    %94 = vperm.xlu0 %93, %v79
    %v95 = vpop.permute.xlu0 %94
    %97 = vset.pattern.permute.xlu0 3
    %98 = vperm.xlu0 %97, %v79
    %v99 = vpop.permute.xlu0 %98
    %101 = vset.pattern.permute.xlu0 4
    %102 = vperm.xlu0 %101, %v79
    %v103 = vpop.permute.xlu0 %102
    %105 = vset.pattern.permute.xlu0 5
    %106 = vperm.xlu0 %105, %v79
    %v107 = vpop.permute.xlu0 %106
    %109 = vset.pattern.permute.xlu0 6
    %110 = vperm.xlu0 %109, %v79
    %v111 = vpop.permute.xlu0 %110
    %113 = vset.pattern.permute.xlu0 7
    %114 = vperm.xlu0 %113, %v79
    %v115 = vpop.permute.xlu0 %114
    %117 = vset.pattern.permute.xlu0 8
    %118 = vperm.xlu0 %117, %v79
    %v119 = vpop.permute.xlu0 %118
    %121 = vset.pattern.permute.xlu0 9
    %122 = vperm.xlu0 %121, %v79
    %v123 = vpop.permute.xlu0 %122
    %125 = vset.pattern.permute.xlu0 10
    %126 = vperm.xlu0 %125, %v79
    %v127 = vpop.permute.xlu0 %126
    %129 = vset.pattern.permute.xlu0 11
    %130 = vperm.xlu0 %129, %v79
    %v131 = vpop.permute.xlu0 %130
    %133 = vset.pattern.permute.xlu0 12
    %134 = vperm.xlu0 %133, %v79
    %v135 = vpop.permute.xlu0 %134
    %137 = vset.pattern.permute.xlu0 13
    %138 = vperm.xlu0 %137, %v79
    %v139 = vpop.permute.xlu0 %138
    %141 = vset.pattern.permute.xlu0 14
    %142 = vperm.xlu0 %141, %v79
    %v143 = vpop.permute.xlu0 %142
    %145 = vset.pattern.permute.xlu0 15
    %146 = vperm.xlu0 %145, %v79
    %v147 = vpop.permute.xlu0 %146
    %149 = vset.pattern.permute.xlu0 16
    %150 = vperm.xlu0 %149, %v79
    %v151 = vpop.permute.xlu0 %150
    %153 = vset.pattern.permute.xlu0 17
    %154 = vperm.xlu0 %153, %v79
    %v155 = vpop.permute.xlu0 %154
    %157 = vset.pattern.permute.xlu0 18
    %158 = vperm.xlu0 %157, %v79
    %v159 = vpop.permute.xlu0 %158
    %161 = vset.pattern.permute.xlu0 19
    %162 = vperm.xlu0 %161, %v79
    %v163 = vpop.permute.xlu0 %162
    %165 = vset.pattern.permute.xlu0 20
    %166 = vperm.xlu0 %165, %v79
    %v167 = vpop.permute.xlu0 %166
    %169 = vset.pattern.permute.xlu0 21
    %170 = vperm.xlu0 %169, %v79
    %v171 = vpop.permute.xlu0 %170
    %173 = vset.pattern.permute.xlu0 22
    %174 = vperm.xlu0 %173, %v79
    %v175 = vpop.permute.xlu0 %174
    %177 = vset.pattern.permute.xlu0 23
    %178 = vperm.xlu0 %177, %v79
    %v179 = vpop.permute.xlu0 %178
    %v181 = vmul.f32 %v87, %v82
    %v182 = vmul.f32 %v91, %v83
    %v183 = vadd.f32 %v181, %v182
    %v184 = vmul.f32 %v87, %v81
    %v185 = vmul.f32 %v91, %v82
    %v186 = vadd.f32 %v184, %v185
    %v187 = vmul.f32 %v95, %v83
    %v188 = vadd.f32 %v186, %v187
    %v189 = vmax.f32 %v183, %v188
    %v190 = vmul.f32 %v95, %v82
    %v191 = vmul.f32 %v99, %v83
    %v192 = vadd.f32 %v190, %v191
    %v193 = vmul.f32 %v91, %v81
    %v194 = vadd.f32 %v192, %v193
    %v195 = vmul.f32 %v95, %v81
    %v196 = vmul.f32 %v99, %v82
    %v197 = vadd.f32 %v195, %v196
    %v198 = vmul.f32 %v103, %v83
    %v199 = vadd.f32 %v197, %v198
    %v200 = vmax.f32 %v194, %v199
    %v201 = vmul.f32 %v103, %v82
    %v202 = vmul.f32 %v107, %v83
    %v203 = vadd.f32 %v201, %v202
    %v204 = vmul.f32 %v99, %v81
    %v205 = vadd.f32 %v203, %v204
    %v206 = vmul.f32 %v103, %v81
    %v207 = vmul.f32 %v107, %v82
    %v208 = vadd.f32 %v206, %v207
    %v209 = vmul.f32 %v111, %v83
    %v210 = vadd.f32 %v208, %v209
    %v211 = vmax.f32 %v205, %v210
    %v212 = vmul.f32 %v111, %v82
    %v213 = vmul.f32 %v115, %v83
    %v214 = vadd.f32 %v212, %v213
    %v215 = vmul.f32 %v107, %v81
    %v216 = vadd.f32 %v214, %v215
    %v217 = vmul.f32 %v111, %v81
    %v218 = vmul.f32 %v115, %v82
    %v219 = vadd.f32 %v217, %v218
    %v220 = vmul.f32 %v119, %v83
    %v221 = vadd.f32 %v219, %v220
    %v222 = vmax.f32 %v216, %v221
    %v223 = vmul.f32 %v119, %v82
    %v224 = vmul.f32 %v123, %v83
    %v225 = vadd.f32 %v223, %v224
    %v226 = vmul.f32 %v115, %v81
    %v227 = vadd.f32 %v225, %v226
    %v228 = vmul.f32 %v119, %v81
    %v229 = vmul.f32 %v123, %v82
    %v230 = vadd.f32 %v228, %v229
    %v231 = vmul.f32 %v127, %v83
    %v232 = vadd.f32 %v230, %v231
    %v233 = vmax.f32 %v227, %v232
    %v234 = vmul.f32 %v127, %v82
    %v235 = vmul.f32 %v131, %v83
    %v236 = vadd.f32 %v234, %v235
    %v237 = vmul.f32 %v123, %v81
    %v238 = vadd.f32 %v236, %v237
    %v239 = vmul.f32 %v127, %v81
    %v240 = vmul.f32 %v131, %v82
    %v241 = vadd.f32 %v239, %v240
    %v242 = vmul.f32 %v135, %v83
    %v243 = vadd.f32 %v241, %v242
    %v244 = vmax.f32 %v238, %v243
    %v245 = vmul.f32 %v135, %v82
    %v246 = vmul.f32 %v139, %v83
    %v247 = vadd.f32 %v245, %v246
    %v248 = vmul.f32 %v131, %v81
    %v249 = vadd.f32 %v247, %v248
    %v250 = vmul.f32 %v135, %v81
    %v251 = vmul.f32 %v139, %v82
    %v252 = vadd.f32 %v250, %v251
    %v253 = vmul.f32 %v143, %v83
    %v254 = vadd.f32 %v252, %v253
    %v255 = vmax.f32 %v249, %v254
    %v256 = vmul.f32 %v143, %v82
    %v257 = vmul.f32 %v147, %v83
    %v258 = vadd.f32 %v256, %v257
    %v259 = vmul.f32 %v139, %v81
    %v260 = vadd.f32 %v258, %v259
    %v261 = vmul.f32 %v143, %v81
    %v262 = vmul.f32 %v147, %v82
    %v263 = vadd.f32 %v261, %v262
    %v264 = vmul.f32 %v151, %v83
    %v265 = vadd.f32 %v263, %v264
    %v266 = vmax.f32 %v260, %v265
    %v267 = vmul.f32 %v151, %v82
    %v268 = vmul.f32 %v155, %v83
    %v269 = vadd.f32 %v267, %v268
    %v270 = vmul.f32 %v147, %v81
    %v271 = vadd.f32 %v269, %v270
    %v272 = vmul.f32 %v151, %v81
    %v273 = vmul.f32 %v155, %v82
    %v274 = vadd.f32 %v272, %v273
    %v275 = vmul.f32 %v159, %v83
    %v276 = vadd.f32 %v274, %v275
    %v277 = vmax.f32 %v271, %v276
    %v278 = vmul.f32 %v159, %v82
    %v279 = vmul.f32 %v163, %v83
    %v280 = vadd.f32 %v278, %v279
    %v281 = vmul.f32 %v155, %v81
    %v282 = vadd.f32 %v280, %v281
    %v283 = vmul.f32 %v159, %v81
    %v284 = vmul.f32 %v163, %v82
    %v285 = vadd.f32 %v283, %v284
    %v286 = vmul.f32 %v167, %v83
    %v287 = vadd.f32 %v285, %v286
    %v288 = vmax.f32 %v282, %v287
    %v289 = vmul.f32 %v167, %v82
    %v290 = vmul.f32 %v171, %v83
    %v291 = vadd.f32 %v289, %v290
    %v292 = vmul.f32 %v163, %v81
    %v293 = vadd.f32 %v291, %v292
    %v294 = vmul.f32 %v167, %v81
    %v295 = vmul.f32 %v171, %v82
    %v296 = vadd.f32 %v294, %v295
    %v297 = vmul.f32 %v175, %v83
    %v298 = vadd.f32 %v296, %v297
    %v299 = vmax.f32 %v293, %v298
    %v300 = vmul.f32 %v175, %v82
    %v301 = vmul.f32 %v179, %v83
    %v302 = vadd.f32 %v300, %v301
    %v303 = vmul.f32 %v171, %v81
    %v304 = vadd.f32 %v302, %v303
    %v305 = vmul.f32 %v175, %v81
    %v306 = vmul.f32 %v179, %v82
    %v307 = vadd.f32 %v305, %v306
    %v308 = vmax.f32 %v304, %v307
    %v309 = vld [vmem:[%s2] sm:$0x1]
    %v311 = vperm.slane %v309, 0
    %v313 = vadd.f32 %v189, %v311
    %v314 = vadd.f32 %v200, %v311
    %v315 = vadd.f32 %v211, %v311
    %v316 = vadd.f32 %v222, %v311
    %v317 = vadd.f32 %v233, %v311
    %v318 = vadd.f32 %v244, %v311
    %v319 = vadd.f32 %v255, %v311
    %v320 = vadd.f32 %v266, %v311
    %v321 = vadd.f32 %v277, %v311
    %v322 = vadd.f32 %v288, %v311
    %v323 = vadd.f32 %v299, %v311
    %v324 = vadd.f32 %v308, %v311
    %v325 = vld [vmem:[%s3] sm:$0xff]
    %v326 = vld [vmem:[%s3 + $0x8] sm:$0xff]
    %v327 = vld [vmem:[%s3 + $0x10] sm:$0xff]
    %v328 = vld [vmem:[%s3 + $0x18] sm:$0xff]
    %v329 = vld [vmem:[%s3 + $0x20] sm:$0xff]
    %v330 = vld [vmem:[%s3 + $0x28] sm:$0xff]
    %v331 = vld [vmem:[%s3 + $0x30] sm:$0xff]
    %v332 = vld [vmem:[%s3 + $0x38] sm:$0xff]
    %v333 = vld [vmem:[%s3 + $0x40] sm:$0xff]
    %v334 = vld [vmem:[%s3 + $0x48] sm:$0xff]
    %v335 = vld [vmem:[%s3 + $0x50] sm:$0xff]
    %v336 = vld [vmem:[%s3 + $0x58] sm:$0xff]
    %v337 = vld [vmem:[%s3 + $0x60] sm:$0xff]
    %v338 = vld [vmem:[%s3 + $0x68] sm:$0xff]
    %v339 = vld [vmem:[%s3 + $0x70] sm:$0xff]
    %v340 = vld [vmem:[%s3 + $0x78] sm:$0xff]
    %v341 = vld [vmem:[%s3 + $0x80] sm:$0xff]
    %v342 = vld [vmem:[%s3 + $0x88] sm:$0xff]
    %v343 = vld [vmem:[%s3 + $0x90] sm:$0xff]
    %v344 = vld [vmem:[%s3 + $0x98] sm:$0xff]
    %v345 = vld [vmem:[%s3 + $0xa0] sm:$0xff]
    %v346 = vld [vmem:[%s3 + $0xa8] sm:$0xff]
    %v347 = vld [vmem:[%s3 + $0xb0] sm:$0xff]
    %v348 = vld [vmem:[%s3 + $0xb8] sm:$0xff]
    %vm349 = vcmask 523264
    %v351 = vsel %vm349, %v313, 0
    %v354 = vsel %vm349, %v314, 0
    %v357 = vsel %vm349, %v315, 0
    %v360 = vsel %vm349, %v316, 0
    %v363 = vsel %vm349, %v317, 0
    %v366 = vsel %vm349, %v318, 0
    %v369 = vsel %vm349, %v319, 0
    %v372 = vsel %vm349, %v320, 0
    %v375 = vsel %vm349, %v321, 0
    %v378 = vsel %vm349, %v322, 0
    %v381 = vsel %vm349, %v323, 0
    %v384 = vsel %vm349, %v324, 0
    %386 = vmatpush.msra.mxu0 0.0
    %387 = vmatpush.msra.mxu0 0.0
    %388 = vmatpush.msra.mxu0 0.0
    %389 = vmatpush.msra.mxu0 0.0
    %390 = vmatpush.msra.mxu0 0.0
    %391 = vmatpush.msra.mxu0 0.0
    %392 = vmatpush.msra.mxu0 0.0
    %393 = vmatpush.msra.mxu0 0.0
    %394 = vmatpush.msra.mxu0 %v332
    %395 = vmatpush.msra.mxu0 %v331
    %396 = vmatpush.msra.mxu0 %v330
    %397 = vmatpush.msra.mxu0 %v329
    %398 = vmatpush.msra.mxu0 %v328
    %399 = vmatpush.msra.mxu0 %v327
    %400 = vmatpush.msra.mxu0 %v326
    %401 = vmatpush.msra.mxu0 %v325
    %402 = vmatmul.f32.gmra.mxu0 %v351
    %v403 = vpop.f32.mrf.mxu0
    %v404 = vadd.f32 0.0, %v403
    %405 = vmatmul.f32.gmra.mxu0 %v354
    %v406 = vpop.f32.mrf.mxu0
    %v407 = vadd.f32 0.0, %v406
    %408 = vmatmul.f32.gmra.mxu0 %v357
    %v409 = vpop.f32.mrf.mxu0
    %v410 = vadd.f32 0.0, %v409
    %411 = vmatmul.f32.gmra.mxu0 %v360
    %v412 = vpop.f32.mrf.mxu0
    %v413 = vadd.f32 0.0, %v412
    %414 = vmatmul.f32.gmra.mxu0 %v363
    %v415 = vpop.f32.mrf.mxu0
    %v416 = vadd.f32 0.0, %v415
    %417 = vmatmul.f32.gmra.mxu0 %v366
    %v418 = vpop.f32.mrf.mxu0
    %v419 = vadd.f32 0.0, %v418
    %420 = vmatmul.f32.gmra.mxu0 %v369
    %v421 = vpop.f32.mrf.mxu0
    %v422 = vadd.f32 0.0, %v421
    %423 = vmatmul.f32.gmra.mxu0 %v372
    %v424 = vpop.f32.mrf.mxu0
    %v425 = vadd.f32 0.0, %v424
    %426 = vmatmul.f32.gmra.mxu0 %v375
    %v427 = vpop.f32.mrf.mxu0
    %v428 = vadd.f32 0.0, %v427
    %429 = vmatmul.f32.gmra.mxu0 %v378
    %v430 = vpop.f32.mrf.mxu0
    %v431 = vadd.f32 0.0, %v430
    %432 = vmatmul.f32.gmra.mxu0 %v381
    %v433 = vpop.f32.mrf.mxu0
    %v434 = vadd.f32 0.0, %v433
    %435 = vmatmul.f32.gmra.mxu0 %v384
    %v436 = vpop.f32.mrf.mxu0
    %437 = vdwg.mxu0
    %438 = vmatpush.msra.mxu0 0.0
    %439 = vmatpush.msra.mxu0 0.0
    %440 = vmatpush.msra.mxu0 0.0
    %441 = vmatpush.msra.mxu0 0.0
    %442 = vmatpush.msra.mxu0 0.0
    %443 = vmatpush.msra.mxu0 0.0
    %444 = vmatpush.msra.mxu0 0.0
    %445 = vmatpush.msra.mxu0 0.0
    %446 = vmatpush.msra.mxu0 %v348
    %447 = vmatpush.msra.mxu0 %v347
    %448 = vmatpush.msra.mxu0 %v346
    %449 = vmatpush.msra.mxu0 %v345
    %450 = vmatpush.msra.mxu0 %v344
    %451 = vmatpush.msra.mxu0 %v343
    %452 = vmatpush.msra.mxu0 %v342
    %453 = vmatpush.msra.mxu0 %v341
    %454 = vmatmul.f32.gmra.mxu0 %v351
    %v455 = vpop.f32.mrf.mxu0
    %456 = vmatmul.f32.gmra.mxu0 %v354
    %v457 = vpop.f32.mrf.mxu0
    %v458 = vadd.f32 0.0, %v457
    %459 = vmatmul.f32.gmra.mxu0 %v357
    %v460 = vpop.f32.mrf.mxu0
    %v461 = vadd.f32 0.0, %v460
    %462 = vmatmul.f32.gmra.mxu0 %v360
    %v463 = vpop.f32.mrf.mxu0
    %v464 = vadd.f32 0.0, %v463
    %465 = vmatmul.f32.gmra.mxu0 %v363
    %v466 = vpop.f32.mrf.mxu0
    %v467 = vadd.f32 0.0, %v466
    %468 = vmatmul.f32.gmra.mxu0 %v366
    %v469 = vpop.f32.mrf.mxu0
    %v470 = vadd.f32 0.0, %v469
    %471 = vmatmul.f32.gmra.mxu0 %v369
    %v472 = vpop.f32.mrf.mxu0
    %v473 = vadd.f32 0.0, %v472
    %474 = vmatmul.f32.gmra.mxu0 %v372
    %v475 = vpop.f32.mrf.mxu0
    %v476 = vadd.f32 0.0, %v475
    %477 = vmatmul.f32.gmra.mxu0 %v375
    %v478 = vpop.f32.mrf.mxu0
    %v479 = vadd.f32 0.0, %v478
    %480 = vmatmul.f32.gmra.mxu0 %v378
    %v481 = vpop.f32.mrf.mxu0
    %v482 = vadd.f32 0.0, %v481
    %483 = vmatmul.f32.gmra.mxu0 %v381
    %v484 = vpop.f32.mrf.mxu0
    %v485 = vadd.f32 0.0, %v484
    %486 = vmatmul.f32.gmra.mxu0 %v384
    %v487 = vpop.f32.mrf.mxu0
    %v488 = vadd.f32 0.0, %v487
    %489 = vdwg.mxu0
    %490 = vmatpush.msra.mxu0 0.0
    %491 = vmatpush.msra.mxu0 0.0
    %492 = vmatpush.msra.mxu0 0.0
    %493 = vmatpush.msra.mxu0 0.0
    %494 = vmatpush.msra.mxu0 0.0
    %495 = vmatpush.msra.mxu0 0.0
    %496 = vmatpush.msra.mxu0 0.0
    %497 = vmatpush.msra.mxu0 0.0
    %498 = vmatpush.msra.mxu0 %v340
    %499 = vmatpush.msra.mxu0 %v339
    %500 = vmatpush.msra.mxu0 %v338
    %501 = vmatpush.msra.mxu0 %v337
    %502 = vmatpush.msra.mxu0 %v336
    %503 = vmatpush.msra.mxu0 %v335
    %504 = vmatpush.msra.mxu0 %v334
    %505 = vmatpush.msra.mxu0 %v333
    %506 = vmatmul.f32.gmra.mxu0 %v351
    %v507 = vpop.f32.mrf.mxu0
    %v508 = vadd.f32 0.0, %v507
    %509 = vmatmul.f32.gmra.mxu0 %v354
    %v510 = vpop.f32.mrf.mxu0
    %v511 = vadd.f32 %v404, %v510
    %512 = vmatmul.f32.gmra.mxu0 %v357
    %v513 = vpop.f32.mrf.mxu0
    %v514 = vadd.f32 %v407, %v513
    %515 = vmatmul.f32.gmra.mxu0 %v360
    %v516 = vpop.f32.mrf.mxu0
    %v517 = vadd.f32 %v410, %v516
    %518 = vmatmul.f32.gmra.mxu0 %v363
    %v519 = vpop.f32.mrf.mxu0
    %v520 = vadd.f32 %v413, %v519
    %521 = vmatmul.f32.gmra.mxu0 %v366
    %v522 = vpop.f32.mrf.mxu0
    %v523 = vadd.f32 %v416, %v522
    %524 = vmatmul.f32.gmra.mxu0 %v369
    %v525 = vpop.f32.mrf.mxu0
    %v526 = vadd.f32 %v419, %v525
    %527 = vmatmul.f32.gmra.mxu0 %v372
    %v528 = vpop.f32.mrf.mxu0
    %v529 = vadd.f32 %v422, %v528
    %530 = vmatmul.f32.gmra.mxu0 %v375
    %v531 = vpop.f32.mrf.mxu0
    %v532 = vadd.f32 %v425, %v531
    %533 = vmatmul.f32.gmra.mxu0 %v378
    %v534 = vpop.f32.mrf.mxu0
    %v535 = vadd.f32 %v428, %v534
    %536 = vmatmul.f32.gmra.mxu0 %v381
    %v537 = vpop.f32.mrf.mxu0
    %v538 = vadd.f32 %v431, %v537
    %539 = vmatmul.f32.gmra.mxu0 %v384
    %v540 = vpop.f32.mrf.mxu0
    %v541 = vadd.f32 %v434, %v540
    %542 = vdwg.mxu0
    %v543 = vadd.f32 %v508, %v458
    %v544 = vadd.f32 %v511, %v461
    %v545 = vadd.f32 %v514, %v464
    %v546 = vadd.f32 %v517, %v467
    %v547 = vadd.f32 %v520, %v470
    %v548 = vadd.f32 %v523, %v473
    %v549 = vadd.f32 %v526, %v476
    %v550 = vadd.f32 %v529, %v479
    %v551 = vadd.f32 %v532, %v482
    %v552 = vadd.f32 %v535, %v485
    %v553 = vadd.f32 %v538, %v488
    %v554 = vadd.f32 %v541, 0.0
    %v555 = vld [vmem:[%s4] sm:$0x1]
    %v557 = vperm.slane %v555, 0
    %v559 = vadd.f32 %v543, %v557
    %v560 = vadd.f32 %v544, %v557
    %v561 = vadd.f32 %v545, %v557
    %v562 = vadd.f32 %v546, %v557
    %v563 = vadd.f32 %v547, %v557
    %v564 = vadd.f32 %v548, %v557
    %v565 = vadd.f32 %v549, %v557
    %v566 = vadd.f32 %v550, %v557
    %v567 = vadd.f32 %v551, %v557
    %v568 = vadd.f32 %v552, %v557
    %v569 = vadd.f32 %v553, %v557
    %v570 = vadd.f32 %v554, %v557
    %v571 = vmax.f32 %v559, %v560
    %v572 = vmax.f32 %v561, %v562
    %v573 = vmax.f32 %v563, %v564
    %v574 = vmax.f32 %v565, %v566
    %v575 = vmax.f32 %v567, %v568
    %v576 = vmax.f32 %v569, %v570
    %v577 = vld [vmem:[%s5] sm:$0xff]
    %v578 = vld [vmem:[%s5 + $0x8] sm:$0xff]
    %v579 = vld [vmem:[%s5 + $0x10] sm:$0xff]
    %v580 = vld [vmem:[%s5 + $0x18] sm:$0xff]
    %v581 = vld [vmem:[%s5 + $0x20] sm:$0xff]
    %v582 = vld [vmem:[%s5 + $0x28] sm:$0xff]
    %v583 = vld [vmem:[%s5 + $0x30] sm:$0xff]
    %v584 = vld [vmem:[%s5 + $0x38] sm:$0xff]
    %v585 = vld [vmem:[%s5 + $0x40] sm:$0xff]
    %v586 = vld [vmem:[%s5 + $0x48] sm:$0xff]
    %v587 = vld [vmem:[%s5 + $0x50] sm:$0xff]
    %v588 = vld [vmem:[%s5 + $0x58] sm:$0xff]
    %v589 = vld [vmem:[%s5 + $0x60] sm:$0xff]
    %v590 = vld [vmem:[%s5 + $0x68] sm:$0xff]
    %v591 = vld [vmem:[%s5 + $0x70] sm:$0xff]
    %v592 = vld [vmem:[%s5 + $0x78] sm:$0xff]
    %v593 = vld [vmem:[%s5 + $0x80] sm:$0xff]
    %v594 = vld [vmem:[%s5 + $0x88] sm:$0xff]
    %v595 = vld [vmem:[%s5 + $0x90] sm:$0xff]
    %v596 = vld [vmem:[%s5 + $0x98] sm:$0xff]
    %v597 = vld [vmem:[%s5 + $0xa0] sm:$0xff]
    %v598 = vld [vmem:[%s5 + $0xa8] sm:$0xff]
    %v599 = vld [vmem:[%s5 + $0xb0] sm:$0xff]
    %v600 = vld [vmem:[%s5 + $0xb8] sm:$0xff]
    %v602 = vsel %vm349, %v571, 0
    %v605 = vsel %vm349, %v572, 0
    %v608 = vsel %vm349, %v573, 0
    %v611 = vsel %vm349, %v574, 0
    %v614 = vsel %vm349, %v575, 0
    %v617 = vsel %vm349, %v576, 0
    %619 = vmatpush.msra.mxu0 0.0
    %620 = vmatpush.msra.mxu0 0.0
    %621 = vmatpush.msra.mxu0 0.0
    %622 = vmatpush.msra.mxu0 0.0
    %623 = vmatpush.msra.mxu0 0.0
    %624 = vmatpush.msra.mxu0 0.0
    %625 = vmatpush.msra.mxu0 0.0
    %626 = vmatpush.msra.mxu0 0.0
    %627 = vmatpush.msra.mxu0 %v584
    %628 = vmatpush.msra.mxu0 %v583
    %629 = vmatpush.msra.mxu0 %v582
    %630 = vmatpush.msra.mxu0 %v581
    %631 = vmatpush.msra.mxu0 %v580
    %632 = vmatpush.msra.mxu0 %v579
    %633 = vmatpush.msra.mxu0 %v578
    %634 = vmatpush.msra.mxu0 %v577
    %635 = vmatmul.f32.gmra.mxu0 %v602
    %v636 = vpop.f32.mrf.mxu0
    %v637 = vadd.f32 0.0, %v636
    %638 = vmatmul.f32.gmra.mxu0 %v605
    %v639 = vpop.f32.mrf.mxu0
    %v640 = vadd.f32 0.0, %v639
    %641 = vmatmul.f32.gmra.mxu0 %v608
    %v642 = vpop.f32.mrf.mxu0
    %v643 = vadd.f32 0.0, %v642
    %644 = vmatmul.f32.gmra.mxu0 %v611
    %v645 = vpop.f32.mrf.mxu0
    %v646 = vadd.f32 0.0, %v645
    %647 = vmatmul.f32.gmra.mxu0 %v614
    %v648 = vpop.f32.mrf.mxu0
    %v649 = vadd.f32 0.0, %v648
    %650 = vmatmul.f32.gmra.mxu0 %v617
    %v651 = vpop.f32.mrf.mxu0
    %652 = vdwg.mxu0
    %653 = vmatpush.msra.mxu0 0.0
    %654 = vmatpush.msra.mxu0 0.0
    %655 = vmatpush.msra.mxu0 0.0
    %656 = vmatpush.msra.mxu0 0.0
    %657 = vmatpush.msra.mxu0 0.0
    %658 = vmatpush.msra.mxu0 0.0
    %659 = vmatpush.msra.mxu0 0.0
    %660 = vmatpush.msra.mxu0 0.0
    %661 = vmatpush.msra.mxu0 %v600
    %662 = vmatpush.msra.mxu0 %v599
    %663 = vmatpush.msra.mxu0 %v598
    %664 = vmatpush.msra.mxu0 %v597
    %665 = vmatpush.msra.mxu0 %v596
    %666 = vmatpush.msra.mxu0 %v595
    %667 = vmatpush.msra.mxu0 %v594
    %668 = vmatpush.msra.mxu0 %v593
    %669 = vmatmul.f32.gmra.mxu0 %v602
    %v670 = vpop.f32.mrf.mxu0
    %671 = vmatmul.f32.gmra.mxu0 %v605
    %v672 = vpop.f32.mrf.mxu0
    %v673 = vadd.f32 0.0, %v672
    %674 = vmatmul.f32.gmra.mxu0 %v608
    %v675 = vpop.f32.mrf.mxu0
    %v676 = vadd.f32 0.0, %v675
    %677 = vmatmul.f32.gmra.mxu0 %v611
    %v678 = vpop.f32.mrf.mxu0
    %v679 = vadd.f32 0.0, %v678
    %680 = vmatmul.f32.gmra.mxu0 %v614
    %v681 = vpop.f32.mrf.mxu0
    %v682 = vadd.f32 0.0, %v681
    %683 = vmatmul.f32.gmra.mxu0 %v617
    %v684 = vpop.f32.mrf.mxu0
    %v685 = vadd.f32 0.0, %v684
    %686 = vdwg.mxu0
    %687 = vmatpush.msra.mxu0 0.0
    %688 = vmatpush.msra.mxu0 0.0
    %689 = vmatpush.msra.mxu0 0.0
    %690 = vmatpush.msra.mxu0 0.0
    %691 = vmatpush.msra.mxu0 0.0
    %692 = vmatpush.msra.mxu0 0.0
    %693 = vmatpush.msra.mxu0 0.0
    %694 = vmatpush.msra.mxu0 0.0
    %695 = vmatpush.msra.mxu0 %v592
    %696 = vmatpush.msra.mxu0 %v591
    %697 = vmatpush.msra.mxu0 %v590
    %698 = vmatpush.msra.mxu0 %v589
    %699 = vmatpush.msra.mxu0 %v588
    %700 = vmatpush.msra.mxu0 %v587
    %701 = vmatpush.msra.mxu0 %v586
    %702 = vmatpush.msra.mxu0 %v585
    %703 = vmatmul.f32.gmra.mxu0 %v602
    %v704 = vpop.f32.mrf.mxu0
    %v705 = vadd.f32 0.0, %v704
    %706 = vmatmul.f32.gmra.mxu0 %v605
    %v707 = vpop.f32.mrf.mxu0
    %v708 = vadd.f32 %v637, %v707
    %709 = vmatmul.f32.gmra.mxu0 %v608
    %v710 = vpop.f32.mrf.mxu0
    %v711 = vadd.f32 %v640, %v710
    %712 = vmatmul.f32.gmra.mxu0 %v611
    %v713 = vpop.f32.mrf.mxu0
    %v714 = vadd.f32 %v643, %v713
    %715 = vmatmul.f32.gmra.mxu0 %v614
    %v716 = vpop.f32.mrf.mxu0
    %v717 = vadd.f32 %v646, %v716
    %718 = vmatmul.f32.gmra.mxu0 %v617
    %v719 = vpop.f32.mrf.mxu0
    %v720 = vadd.f32 %v649, %v719
    %721 = vdwg.mxu0
    %v722 = vadd.f32 %v705, %v673
    %v723 = vadd.f32 %v708, %v676
    %v724 = vadd.f32 %v711, %v679
    %v725 = vadd.f32 %v714, %v682
    %v726 = vadd.f32 %v717, %v685
    %v727 = vadd.f32 %v720, 0.0
    %v728 = vld [vmem:[%s6] sm:$0x1]
    %v730 = vperm.slane %v728, 0
    %v732 = vadd.f32 %v722, %v730
    %v733 = vadd.f32 %v723, %v730
    %v734 = vadd.f32 %v724, %v730
    %v735 = vadd.f32 %v725, %v730
    %v736 = vadd.f32 %v726, %v730
    %v737 = vadd.f32 %v727, %v730
    %v738 = vmax.f32 %v732, %v733
    %v739 = vmax.f32 %v734, %v735
    %v740 = vmax.f32 %v736, %v737
    %v741 = vld [vmem:[#allocation3] sm:$0xff]
    %v742 = vld [vmem:[#allocation3 + $0x8] sm:$0xff]
    %v743 = vld [vmem:[#allocation3 + $0x10] sm:$0xff]
    %v744 = vld [vmem:[#allocation3 + $0x18] sm:$0xff]
    %v745 = vld [vmem:[#allocation3 + $0x20] sm:$0xff]
    %v746 = vld [vmem:[#allocation3 + $0x28] sm:$0xff]
    %v747 = vld [vmem:[#allocation3 + $0x30] sm:$0xff]
    %v748 = vld [vmem:[#allocation3 + $0x38] sm:$0xff]
    %v749 = vld [vmem:[#allocation3 + $0x40] sm:$0xff]
    %v750 = vld [vmem:[#allocation3 + $0x48] sm:$0xff]
    %v751 = vld [vmem:[#allocation3 + $0x50] sm:$0xff]
    %v752 = vld [vmem:[#allocation3 + $0x58] sm:$0xff]
    %v753 = vld [vmem:[#allocation3 + $0x60] sm:$0xff]
    %v754 = vld [vmem:[#allocation3 + $0x68] sm:$0xff]
    %v755 = vld [vmem:[#allocation3 + $0x70] sm:$0xff]
    %v756 = vld [vmem:[#allocation3 + $0x78] sm:$0xff]
    %v757 = vld [vmem:[#allocation3 + $0x80] sm:$0xff]
    %v758 = vld [vmem:[#allocation3 + $0x88] sm:$0xff]
    %v759 = vld [vmem:[#allocation3 + $0x90] sm:$0xff]
    %v760 = vld [vmem:[#allocation3 + $0x98] sm:$0xff]
    %v761 = vld [vmem:[#allocation3 + $0xa0] sm:$0xff]
    %v762 = vld [vmem:[#allocation3 + $0xa8] sm:$0xff]
    %v763 = vld [vmem:[#allocation3 + $0xb0] sm:$0xff]
    %v764 = vld [vmem:[#allocation3 + $0xb8] sm:$0xff]
    %v765 = vld [vmem:[#allocation3 + $0xc0] sm:$0xff]
    %v766 = vld [vmem:[#allocation3 + $0xc8] sm:$0xff]
    %v767 = vld [vmem:[#allocation3 + $0xd0] sm:$0xff]
    %v768 = vld [vmem:[#allocation3 + $0xd8] sm:$0xff]
    %v769 = vld [vmem:[#allocation3 + $0xe0] sm:$0xff]
    %v770 = vld [vmem:[#allocation3 + $0xe8] sm:$0xff]
    %v771 = vld [vmem:[#allocation3 + $0xf0] sm:$0xff]
    %v772 = vld [vmem:[#allocation3 + $0xf8] sm:$0xff]
    %v773 = vld [vmem:[#allocation3 + $0x100] sm:$0xff]
    %v774 = vld [vmem:[#allocation3 + $0x108] sm:$0xff]
    %v775 = vld [vmem:[#allocation3 + $0x110] sm:$0xff]
    %v776 = vld [vmem:[#allocation3 + $0x118] sm:$0xff]
    %v777 = vld [vmem:[#allocation3 + $0x120] sm:$0xff]
    %v778 = vld [vmem:[#allocation3 + $0x128] sm:$0xff]
    %v779 = vld [vmem:[#allocation3 + $0x130] sm:$0xff]
    %v780 = vld [vmem:[#allocation3 + $0x138] sm:$0xff]
    %v781 = vld [vmem:[#allocation3 + $0x140] sm:$0xff]
    %v782 = vld [vmem:[#allocation3 + $0x148] sm:$0xff]
    %v783 = vld [vmem:[#allocation3 + $0x150] sm:$0xff]
    %v784 = vld [vmem:[#allocation3 + $0x158] sm:$0xff]
    %v785 = vld [vmem:[#allocation3 + $0x160] sm:$0xff]
    %v786 = vld [vmem:[#allocation3 + $0x168] sm:$0xff]
    %v787 = vld [vmem:[#allocation3 + $0x170] sm:$0xff]
    %v788 = vld [vmem:[#allocation3 + $0x178] sm:$0xff]
    %v789 = vld [vmem:[#allocation3 + $0x180] sm:$0xff]
    %v790 = vld [vmem:[#allocation3 + $0x188] sm:$0xff]
    %v791 = vld [vmem:[#allocation3 + $0x190] sm:$0xff]
    %v792 = vld [vmem:[#allocation3 + $0x198] sm:$0xff]
    %v793 = vld [vmem:[#allocation3 + $0x1a0] sm:$0xff]
    %v794 = vld [vmem:[#allocation3 + $0x1a8] sm:$0xff]
    %v795 = vld [vmem:[#allocation3 + $0x1b0] sm:$0xff]
    %v796 = vld [vmem:[#allocation3 + $0x1b8] sm:$0xff]
    %v797 = vld [vmem:[#allocation3 + $0x1c0] sm:$0xff]
    %v798 = vld [vmem:[#allocation3 + $0x1c8] sm:$0xff]
    %v799 = vld [vmem:[#allocation3 + $0x1d0] sm:$0xff]
    %v800 = vld [vmem:[#allocation3 + $0x1d8] sm:$0xff]
    %v801 = vld [vmem:[#allocation3 + $0x1e0] sm:$0xff]
    %v802 = vld [vmem:[#allocation3 + $0x1e8] sm:$0xff]
    %v803 = vld [vmem:[#allocation3 + $0x1f0] sm:$0xff]
    %v804 = vld [vmem:[#allocation3 + $0x1f8] sm:$0xff]
    %v805 = vld [vmem:[#allocation3 + $0x200] sm:$0xff]
    %v806 = vld [vmem:[#allocation3 + $0x208] sm:$0xff]
    %v807 = vld [vmem:[#allocation3 + $0x210] sm:$0xff]
    %v808 = vld [vmem:[#allocation3 + $0x218] sm:$0xff]
    %v809 = vld [vmem:[#allocation3 + $0x220] sm:$0xff]
    %v810 = vld [vmem:[#allocation3 + $0x228] sm:$0xff]
    %v811 = vld [vmem:[#allocation3 + $0x230] sm:$0xff]
    %v812 = vld [vmem:[#allocation3 + $0x238] sm:$0xff]
    %v813 = vld [vmem:[#allocation3 + $0x240] sm:$0xff]
    %v814 = vld [vmem:[#allocation3 + $0x248] sm:$0xff]
    %v815 = vld [vmem:[#allocation3 + $0x250] sm:$0xff]
    %v816 = vld [vmem:[#allocation3 + $0x258] sm:$0xff]
    %v817 = vld [vmem:[#allocation3 + $0x260] sm:$0xff]
    %v818 = vld [vmem:[#allocation3 + $0x268] sm:$0xff]
    %v819 = vld [vmem:[#allocation3 + $0x270] sm:$0xff]
    %v820 = vld [vmem:[#allocation3 + $0x278] sm:$0xff]
    %v821 = vld [vmem:[#allocation3 + $0x280] sm:$0xff]
    %v822 = vld [vmem:[#allocation3 + $0x288] sm:$0xff]
    %v823 = vld [vmem:[#allocation3 + $0x290] sm:$0xff]
    %v824 = vld [vmem:[#allocation3 + $0x298] sm:$0xff]
    %v825 = vld [vmem:[#allocation3 + $0x2a0] sm:$0xff]
    %v826 = vld [vmem:[#allocation3 + $0x2a8] sm:$0xff]
    %v827 = vld [vmem:[#allocation3 + $0x2b0] sm:$0xff]
    %v828 = vld [vmem:[#allocation3 + $0x2b8] sm:$0xff]
    %v829 = vld [vmem:[#allocation3 + $0x2c0] sm:$0xff]
    %v830 = vld [vmem:[#allocation3 + $0x2c8] sm:$0xff]
    %v831 = vld [vmem:[#allocation3 + $0x2d0] sm:$0xff]
    %v832 = vld [vmem:[#allocation3 + $0x2d8] sm:$0xff]
    %v833 = vld [vmem:[#allocation3 + $0x2e0] sm:$0xff]
    %v834 = vld [vmem:[#allocation3 + $0x2e8] sm:$0xff]
    %v835 = vld [vmem:[#allocation3 + $0x2f0] sm:$0xff]
    %v836 = vld [vmem:[#allocation3 + $0x2f8] sm:$0xff]
    %v837 = vld [vmem:[#allocation3 + $0x300] sm:$0xff]
    %v838 = vld [vmem:[#allocation3 + $0x308] sm:$0xff]
    %v839 = vld [vmem:[#allocation3 + $0x310] sm:$0xff]
    %v840 = vld [vmem:[#allocation3 + $0x318] sm:$0xff]
    %v841 = vld [vmem:[#allocation3 + $0x320] sm:$0xff]
    %v842 = vld [vmem:[#allocation3 + $0x328] sm:$0xff]
    %v843 = vld [vmem:[#allocation3 + $0x330] sm:$0xff]
    %v844 = vld [vmem:[#allocation3 + $0x338] sm:$0xff]
    %v845 = vld [vmem:[#allocation3 + $0x340] sm:$0xff]
    %v846 = vld [vmem:[#allocation3 + $0x348] sm:$0xff]
    %v847 = vld [vmem:[#allocation3 + $0x350] sm:$0xff]
    %v848 = vld [vmem:[#allocation3 + $0x358] sm:$0xff]
    %v849 = vld [vmem:[#allocation3 + $0x360] sm:$0xff]
    %v850 = vld [vmem:[#allocation3 + $0x368] sm:$0xff]
    %v851 = vld [vmem:[#allocation3 + $0x370] sm:$0xff]
    %v852 = vld [vmem:[#allocation3 + $0x378] sm:$0xff]
    %v853 = vld [vmem:[#allocation3 + $0x380] sm:$0xff]
    %v854 = vld [vmem:[#allocation3 + $0x388] sm:$0xff]
    %v855 = vld [vmem:[#allocation3 + $0x390] sm:$0xff]
    %v856 = vld [vmem:[#allocation3 + $0x398] sm:$0xff]
    %v857 = vld [vmem:[#allocation3 + $0x3a0] sm:$0xff]
    %v858 = vld [vmem:[#allocation3 + $0x3a8] sm:$0xff]
    %v859 = vld [vmem:[#allocation3 + $0x3b0] sm:$0xff]
    %v860 = vld [vmem:[#allocation3 + $0x3b8] sm:$0xff]
    %v861 = vld [vmem:[#allocation3 + $0x3c0] sm:$0xff]
    %v862 = vld [vmem:[#allocation3 + $0x3c8] sm:$0xff]
    %v863 = vld [vmem:[#allocation3 + $0x3d0] sm:$0xff]
    %v864 = vld [vmem:[#allocation3 + $0x3d8] sm:$0xff]
    %v865 = vld [vmem:[#allocation3 + $0x3e0] sm:$0xff]
    %v866 = vld [vmem:[#allocation3 + $0x3e8] sm:$0xff]
    %v867 = vld [vmem:[#allocation3 + $0x3f0] sm:$0xff]
    %v868 = vld [vmem:[#allocation3 + $0x3f8] sm:$0xff]
    %v869 = vld [vmem:[#allocation3 + $0x400] sm:$0xff]
    %v870 = vld [vmem:[#allocation3 + $0x408] sm:$0xff]
    %v871 = vld [vmem:[#allocation3 + $0x410] sm:$0xff]
    %v872 = vld [vmem:[#allocation3 + $0x418] sm:$0xff]
    %v873 = vld [vmem:[#allocation3 + $0x420] sm:$0xff]
    %v874 = vld [vmem:[#allocation3 + $0x428] sm:$0xff]
    %v875 = vld [vmem:[#allocation3 + $0x430] sm:$0xff]
    %v876 = vld [vmem:[#allocation3 + $0x438] sm:$0xff]
    %v877 = vld [vmem:[#allocation3 + $0x440] sm:$0xff]
    %v878 = vld [vmem:[#allocation3 + $0x448] sm:$0xff]
    %v879 = vld [vmem:[#allocation3 + $0x450] sm:$0xff]
    %v880 = vld [vmem:[#allocation3 + $0x458] sm:$0xff]
    %v881 = vld [vmem:[#allocation3 + $0x460] sm:$0xff]
    %v882 = vld [vmem:[#allocation3 + $0x468] sm:$0xff]
    %v883 = vld [vmem:[#allocation3 + $0x470] sm:$0xff]
    %v884 = vld [vmem:[#allocation3 + $0x478] sm:$0xff]
    %v885 = vld [vmem:[#allocation3 + $0x480] sm:$0xff]
    %v886 = vld [vmem:[#allocation3 + $0x488] sm:$0xff]
    %v887 = vld [vmem:[#allocation3 + $0x490] sm:$0xff]
    %v888 = vld [vmem:[#allocation3 + $0x498] sm:$0xff]
    %v889 = vld [vmem:[#allocation3 + $0x4a0] sm:$0xff]
    %v890 = vld [vmem:[#allocation3 + $0x4a8] sm:$0xff]
    %v891 = vld [vmem:[#allocation3 + $0x4b0] sm:$0xff]
    %v892 = vld [vmem:[#allocation3 + $0x4b8] sm:$0xff]
    %v893 = vld [vmem:[#allocation3 + $0x4c0] sm:$0xff]
    %v894 = vld [vmem:[#allocation3 + $0x4c8] sm:$0xff]
    %v895 = vld [vmem:[#allocation3 + $0x4d0] sm:$0xff]
    %v896 = vld [vmem:[#allocation3 + $0x4d8] sm:$0xff]
    %v897 = vld [vmem:[#allocation3 + $0x4e0] sm:$0xff]
    %v898 = vld [vmem:[#allocation3 + $0x4e8] sm:$0xff]
    %v899 = vld [vmem:[#allocation3 + $0x4f0] sm:$0xff]
    %v900 = vld [vmem:[#allocation3 + $0x4f8] sm:$0xff]
    %v901 = vld [vmem:[#allocation3 + $0x500] sm:$0xff]
    %v902 = vld [vmem:[#allocation3 + $0x508] sm:$0xff]
    %v903 = vld [vmem:[#allocation3 + $0x510] sm:$0xff]
    %v904 = vld [vmem:[#allocation3 + $0x518] sm:$0xff]
    %v905 = vld [vmem:[#allocation3 + $0x520] sm:$0xff]
    %v906 = vld [vmem:[#allocation3 + $0x528] sm:$0xff]
    %v907 = vld [vmem:[#allocation3 + $0x530] sm:$0xff]
    %v908 = vld [vmem:[#allocation3 + $0x538] sm:$0xff]
    %v909 = vld [vmem:[#allocation3 + $0x540] sm:$0xff]
    %v910 = vld [vmem:[#allocation3 + $0x548] sm:$0xff]
    %v911 = vld [vmem:[#allocation3 + $0x550] sm:$0xff]
    %v912 = vld [vmem:[#allocation3 + $0x558] sm:$0xff]
    %v913 = vld [vmem:[#allocation3 + $0x560] sm:$0xff]
    %v914 = vld [vmem:[#allocation3 + $0x568] sm:$0xff]
    %v915 = vld [vmem:[#allocation3 + $0x570] sm:$0xff]
    %v916 = vld [vmem:[#allocation3 + $0x578] sm:$0xff]
    %v917 = vld [vmem:[#allocation3 + $0x580] sm:$0xff]
    %v918 = vld [vmem:[#allocation3 + $0x588] sm:$0xff]
    %v919 = vld [vmem:[#allocation3 + $0x590] sm:$0xff]
    %v920 = vld [vmem:[#allocation3 + $0x598] sm:$0xff]
    %v921 = vld [vmem:[#allocation3 + $0x5a0] sm:$0xff]
    %v922 = vld [vmem:[#allocation3 + $0x5a8] sm:$0xff]
    %v923 = vld [vmem:[#allocation3 + $0x5b0] sm:$0xff]
    %v924 = vld [vmem:[#allocation3 + $0x5b8] sm:$0xff]
    %v925 = vld [vmem:[#allocation3 + $0x5c0] sm:$0xff]
    %v926 = vld [vmem:[#allocation3 + $0x5c8] sm:$0xff]
    %v927 = vld [vmem:[#allocation3 + $0x5d0] sm:$0xff]
    %v928 = vld [vmem:[#allocation3 + $0x5d8] sm:$0xff]
    %v929 = vld [vmem:[#allocation3 + $0x5e0] sm:$0xff]
    %v930 = vld [vmem:[#allocation3 + $0x5e8] sm:$0xff]
    %v931 = vld [vmem:[#allocation3 + $0x5f0] sm:$0xff]
    %v932 = vld [vmem:[#allocation3 + $0x5f8] sm:$0xff]
    %v933 = vld [vmem:[%s8] sm:$0xf]
    %v935 = vperm.slane %v933, 0
    %v936 = vperm.slane %v933, 1
    %v937 = vperm.slane %v933, 2
    %v938 = vperm.slane %v933, 3
    %943 = vmatpush.msra.mxu0 %v801
    %944 = vmatpush.msra.mxu0 %v797
    %945 = vmatpush.msra.mxu0 %v793
    %946 = vmatpush.msra.mxu0 %v789
    %947 = vmatpush.msra.mxu0 %v785
    %948 = vmatpush.msra.mxu0 %v781
    %949 = vmatpush.msra.mxu0 %v777
    %950 = vmatpush.msra.mxu0 %v773
    %951 = vmatpush.msra.mxu0 %v769
    %952 = vmatpush.msra.mxu0 %v765
    %953 = vmatpush.msra.mxu0 %v761
    %954 = vmatpush.msra.mxu0 %v757
    %955 = vmatpush.msra.mxu0 %v753
    %956 = vmatpush.msra.mxu0 %v749
    %957 = vmatpush.msra.mxu0 %v745
    %958 = vmatpush.msra.mxu0 %v741
    %959 = vmatmul.f32.gmra.mxu0 %v738
    %v960 = vpop.f32.mrf.mxu0
    %v961 = vadd.f32 %v935, %v960
    %962 = vdwg.mxu0
    %963 = vmatpush.msra.mxu0 %v865
    %964 = vmatpush.msra.mxu0 %v861
    %965 = vmatpush.msra.mxu0 %v857
    %966 = vmatpush.msra.mxu0 %v853
    %967 = vmatpush.msra.mxu0 %v849
    %968 = vmatpush.msra.mxu0 %v845
    %969 = vmatpush.msra.mxu0 %v841
    %970 = vmatpush.msra.mxu0 %v837
    %971 = vmatpush.msra.mxu0 %v833
    %972 = vmatpush.msra.mxu0 %v829
    %973 = vmatpush.msra.mxu0 %v825
    %974 = vmatpush.msra.mxu0 %v821
    %975 = vmatpush.msra.mxu0 %v817
    %976 = vmatpush.msra.mxu0 %v813
    %977 = vmatpush.msra.mxu0 %v809
    %978 = vmatpush.msra.mxu0 %v805
    %979 = vmatmul.f32.gmra.mxu0 %v739
    %v980 = vpop.f32.mrf.mxu0
    %v981 = vadd.f32 %v961, %v980
    %982 = vdwg.mxu0
    %983 = vmatpush.msra.mxu0 %v929
    %984 = vmatpush.msra.mxu0 %v925
    %985 = vmatpush.msra.mxu0 %v921
    %986 = vmatpush.msra.mxu0 %v917
    %987 = vmatpush.msra.mxu0 %v913
    %988 = vmatpush.msra.mxu0 %v909
    %989 = vmatpush.msra.mxu0 %v905
    %990 = vmatpush.msra.mxu0 %v901
    %991 = vmatpush.msra.mxu0 %v897
    %992 = vmatpush.msra.mxu0 %v893
    %993 = vmatpush.msra.mxu0 %v889
    %994 = vmatpush.msra.mxu0 %v885
    %995 = vmatpush.msra.mxu0 %v881
    %996 = vmatpush.msra.mxu0 %v877
    %997 = vmatpush.msra.mxu0 %v873
    %998 = vmatpush.msra.mxu0 %v869
    %999 = vmatmul.f32.gmra.mxu0 %v740
    %v1000 = vpop.f32.mrf.mxu0
    %v1001 = vadd.f32 %v981, %v1000
    %1002 = vdwg.mxu0
    %1003 = vmatpush.msra.mxu0 %v802
    %1004 = vmatpush.msra.mxu0 %v798
    %1005 = vmatpush.msra.mxu0 %v794
    %1006 = vmatpush.msra.mxu0 %v790
    %1007 = vmatpush.msra.mxu0 %v786
    %1008 = vmatpush.msra.mxu0 %v782
    %1009 = vmatpush.msra.mxu0 %v778
    %1010 = vmatpush.msra.mxu0 %v774
    %1011 = vmatpush.msra.mxu0 %v770
    %1012 = vmatpush.msra.mxu0 %v766
    %1013 = vmatpush.msra.mxu0 %v762
    %1014 = vmatpush.msra.mxu0 %v758
    %1015 = vmatpush.msra.mxu0 %v754
    %1016 = vmatpush.msra.mxu0 %v750
    %1017 = vmatpush.msra.mxu0 %v746
    %1018 = vmatpush.msra.mxu0 %v742
    %1019 = vmatmul.f32.gmra.mxu0 %v738
    %v1020 = vpop.f32.mrf.mxu0
    %v1021 = vadd.f32 %v936, %v1020
    %1022 = vdwg.mxu0
    %1023 = vmatpush.msra.mxu0 %v866
    %1024 = vmatpush.msra.mxu0 %v862
    %1025 = vmatpush.msra.mxu0 %v858
    %1026 = vmatpush.msra.mxu0 %v854
    %1027 = vmatpush.msra.mxu0 %v850
    %1028 = vmatpush.msra.mxu0 %v846
    %1029 = vmatpush.msra.mxu0 %v842
    %1030 = vmatpush.msra.mxu0 %v838
    %1031 = vmatpush.msra.mxu0 %v834
    %1032 = vmatpush.msra.mxu0 %v830
    %1033 = vmatpush.msra.mxu0 %v826
    %1034 = vmatpush.msra.mxu0 %v822
    %1035 = vmatpush.msra.mxu0 %v818
    %1036 = vmatpush.msra.mxu0 %v814
    %1037 = vmatpush.msra.mxu0 %v810
    %1038 = vmatpush.msra.mxu0 %v806
    %1039 = vmatmul.f32.gmra.mxu0 %v739
    %v1040 = vpop.f32.mrf.mxu0
    %v1041 = vadd.f32 %v1021, %v1040
    %1042 = vdwg.mxu0
    %1043 = vmatpush.msra.mxu0 %v930
    %1044 = vmatpush.msra.mxu0 %v926
    %1045 = vmatpush.msra.mxu0 %v922
    %1046 = vmatpush.msra.mxu0 %v918
    %1047 = vmatpush.msra.mxu0 %v914
    %1048 = vmatpush.msra.mxu0 %v910
    %1049 = vmatpush.msra.mxu0 %v906
    %1050 = vmatpush.msra.mxu0 %v902
    %1051 = vmatpush.msra.mxu0 %v898
    %1052 = vmatpush.msra.mxu0 %v894
    %1053 = vmatpush.msra.mxu0 %v890
    %1054 = vmatpush.msra.mxu0 %v886
    %1055 = vmatpush.msra.mxu0 %v882
    %1056 = vmatpush.msra.mxu0 %v878
    %1057 = vmatpush.msra.mxu0 %v874
    %1058 = vmatpush.msra.mxu0 %v870
    %1059 = vmatmul.f32.gmra.mxu0 %v740
    %v1060 = vpop.f32.mrf.mxu0
    %v1061 = vadd.f32 %v1041, %v1060
    %1062 = vdwg.mxu0
    %1063 = vmatpush.msra.mxu0 %v803
    %1064 = vmatpush.msra.mxu0 %v799
    %1065 = vmatpush.msra.mxu0 %v795
    %1066 = vmatpush.msra.mxu0 %v791
    %1067 = vmatpush.msra.mxu0 %v787
    %1068 = vmatpush.msra.mxu0 %v783
    %1069 = vmatpush.msra.mxu0 %v779
    %1070 = vmatpush.msra.mxu0 %v775
    %1071 = vmatpush.msra.mxu0 %v771
    %1072 = vmatpush.msra.mxu0 %v767
    %1073 = vmatpush.msra.mxu0 %v763
    %1074 = vmatpush.msra.mxu0 %v759
    %1075 = vmatpush.msra.mxu0 %v755
    %1076 = vmatpush.msra.mxu0 %v751
    %1077 = vmatpush.msra.mxu0 %v747
    %1078 = vmatpush.msra.mxu0 %v743
    %1079 = vmatmul.f32.gmra.mxu0 %v738
    %v1080 = vpop.f32.mrf.mxu0
    %v1081 = vadd.f32 %v937, %v1080
    %1082 = vdwg.mxu0
    %1083 = vmatpush.msra.mxu0 %v867
    %1084 = vmatpush.msra.mxu0 %v863
    %1085 = vmatpush.msra.mxu0 %v859
    %1086 = vmatpush.msra.mxu0 %v855
    %1087 = vmatpush.msra.mxu0 %v851
    %1088 = vmatpush.msra.mxu0 %v847
    %1089 = vmatpush.msra.mxu0 %v843
    %1090 = vmatpush.msra.mxu0 %v839
    %1091 = vmatpush.msra.mxu0 %v835
    %1092 = vmatpush.msra.mxu0 %v831
    %1093 = vmatpush.msra.mxu0 %v827
    %1094 = vmatpush.msra.mxu0 %v823
    %1095 = vmatpush.msra.mxu0 %v819
    %1096 = vmatpush.msra.mxu0 %v815
    %1097 = vmatpush.msra.mxu0 %v811
    %1098 = vmatpush.msra.mxu0 %v807
    %1099 = vmatmul.f32.gmra.mxu0 %v739
    %v1100 = vpop.f32.mrf.mxu0
    %v1101 = vadd.f32 %v1081, %v1100
    %1102 = vdwg.mxu0
    %1103 = vmatpush.msra.mxu0 %v931
    %1104 = vmatpush.msra.mxu0 %v927
    %1105 = vmatpush.msra.mxu0 %v923
    %1106 = vmatpush.msra.mxu0 %v919
    %1107 = vmatpush.msra.mxu0 %v915
    %1108 = vmatpush.msra.mxu0 %v911
    %1109 = vmatpush.msra.mxu0 %v907
    %1110 = vmatpush.msra.mxu0 %v903
    %1111 = vmatpush.msra.mxu0 %v899
    %1112 = vmatpush.msra.mxu0 %v895
    %1113 = vmatpush.msra.mxu0 %v891
    %1114 = vmatpush.msra.mxu0 %v887
    %1115 = vmatpush.msra.mxu0 %v883
    %1116 = vmatpush.msra.mxu0 %v879
    %1117 = vmatpush.msra.mxu0 %v875
    %1118 = vmatpush.msra.mxu0 %v871
    %1119 = vmatmul.f32.gmra.mxu0 %v740
    %v1120 = vpop.f32.mrf.mxu0
    %v1121 = vadd.f32 %v1101, %v1120
    %1122 = vdwg.mxu0
    %1123 = vmatpush.msra.mxu0 %v804
    %1124 = vmatpush.msra.mxu0 %v800
    %1125 = vmatpush.msra.mxu0 %v796
    %1126 = vmatpush.msra.mxu0 %v792
    %1127 = vmatpush.msra.mxu0 %v788
    %1128 = vmatpush.msra.mxu0 %v784
    %1129 = vmatpush.msra.mxu0 %v780
    %1130 = vmatpush.msra.mxu0 %v776
    %1131 = vmatpush.msra.mxu0 %v772
    %1132 = vmatpush.msra.mxu0 %v768
    %1133 = vmatpush.msra.mxu0 %v764
    %1134 = vmatpush.msra.mxu0 %v760
    %1135 = vmatpush.msra.mxu0 %v756
    %1136 = vmatpush.msra.mxu0 %v752
    %1137 = vmatpush.msra.mxu0 %v748
    %1138 = vmatpush.msra.mxu0 %v744
    %1139 = vmatmul.f32.gmra.mxu0 %v738
    %v1140 = vpop.f32.mrf.mxu0
    %v1141 = vadd.f32 %v938, %v1140
    %1142 = vdwg.mxu0
    %1143 = vmatpush.msra.mxu0 %v868
    %1144 = vmatpush.msra.mxu0 %v864
    %1145 = vmatpush.msra.mxu0 %v860
    %1146 = vmatpush.msra.mxu0 %v856
    %1147 = vmatpush.msra.mxu0 %v852
    %1148 = vmatpush.msra.mxu0 %v848
    %1149 = vmatpush.msra.mxu0 %v844
    %1150 = vmatpush.msra.mxu0 %v840
    %1151 = vmatpush.msra.mxu0 %v836
    %1152 = vmatpush.msra.mxu0 %v832
    %1153 = vmatpush.msra.mxu0 %v828
    %1154 = vmatpush.msra.mxu0 %v824
    %1155 = vmatpush.msra.mxu0 %v820
    %1156 = vmatpush.msra.mxu0 %v816
    %1157 = vmatpush.msra.mxu0 %v812
    %1158 = vmatpush.msra.mxu0 %v808
    %1159 = vmatmul.f32.gmra.mxu0 %v739
    %v1160 = vpop.f32.mrf.mxu0
    %v1161 = vadd.f32 %v1141, %v1160
    %1162 = vdwg.mxu0
    %1163 = vmatpush.msra.mxu0 %v932
    %1164 = vmatpush.msra.mxu0 %v928
    %1165 = vmatpush.msra.mxu0 %v924
    %1166 = vmatpush.msra.mxu0 %v920
    %1167 = vmatpush.msra.mxu0 %v916
    %1168 = vmatpush.msra.mxu0 %v912
    %1169 = vmatpush.msra.mxu0 %v908
    %1170 = vmatpush.msra.mxu0 %v904
    %1171 = vmatpush.msra.mxu0 %v900
    %1172 = vmatpush.msra.mxu0 %v896
    %1173 = vmatpush.msra.mxu0 %v892
    %1174 = vmatpush.msra.mxu0 %v888
    %1175 = vmatpush.msra.mxu0 %v884
    %1176 = vmatpush.msra.mxu0 %v880
    %1177 = vmatpush.msra.mxu0 %v876
    %1178 = vmatpush.msra.mxu0 %v872
    %1179 = vmatmul.f32.gmra.mxu0 %v740
    %v1180 = vpop.f32.mrf.mxu0
    %v1181 = vadd.f32 %v1161, %v1180
    %1182 = vdwg.mxu0
    %v1183 = vmax.f32 %v1001, 0.0
    %v1184 = vmax.f32 %v1061, 0.0
    %v1185 = vmax.f32 %v1121, 0.0
    %v1186 = vmax.f32 %v1181, 0.0
    %v1187 = vld [vmem:[#allocation6] sm:$0xff]
    %v1188 = vld [vmem:[#allocation6 + $0x8] sm:$0xff]
    %v1189 = vld [vmem:[#allocation6 + $0x10] sm:$0xff]
    %v1190 = vld [vmem:[#allocation6 + $0x18] sm:$0xff]
    %v1191 = vld [vmem:[#allocation6 + $0x20] sm:$0xff]
    %v1192 = vld [vmem:[#allocation6 + $0x28] sm:$0xff]
    %v1193 = vld [vmem:[#allocation6 + $0x30] sm:$0xff]
    %v1194 = vld [vmem:[#allocation6 + $0x38] sm:$0xff]
    %v1195 = vld [vmem:[#allocation6 + $0x40] sm:$0xff]
    %v1196 = vld [vmem:[#allocation6 + $0x48] sm:$0xff]
    %v1197 = vld [vmem:[#allocation6 + $0x50] sm:$0xff]
    %v1198 = vld [vmem:[#allocation6 + $0x58] sm:$0xff]
    %v1199 = vld [vmem:[#allocation6 + $0x60] sm:$0xff]
    %v1200 = vld [vmem:[#allocation6 + $0x68] sm:$0xff]
    %v1201 = vld [vmem:[#allocation6 + $0x70] sm:$0xff]
    %v1202 = vld [vmem:[#allocation6 + $0x78] sm:$0xff]
    %v1203 = vld [vmem:[#allocation6 + $0x80] sm:$0xff]
    %v1204 = vld [vmem:[#allocation6 + $0x88] sm:$0xff]
    %v1205 = vld [vmem:[#allocation6 + $0x90] sm:$0xff]
    %v1206 = vld [vmem:[#allocation6 + $0x98] sm:$0xff]
    %v1207 = vld [vmem:[#allocation6 + $0xa0] sm:$0xff]
    %v1208 = vld [vmem:[#allocation6 + $0xa8] sm:$0xff]
    %v1209 = vld [vmem:[#allocation6 + $0xb0] sm:$0xff]
    %v1210 = vld [vmem:[#allocation6 + $0xb8] sm:$0xff]
    %v1211 = vld [vmem:[#allocation6 + $0xc0] sm:$0xff]
    %v1212 = vld [vmem:[#allocation6 + $0xc8] sm:$0xff]
    %v1213 = vld [vmem:[#allocation6 + $0xd0] sm:$0xff]
    %v1214 = vld [vmem:[#allocation6 + $0xd8] sm:$0xff]
    %v1215 = vld [vmem:[#allocation6 + $0xe0] sm:$0xff]
    %v1216 = vld [vmem:[#allocation6 + $0xe8] sm:$0xff]
    %v1217 = vld [vmem:[#allocation6 + $0xf0] sm:$0xff]
    %v1218 = vld [vmem:[#allocation6 + $0xf8] sm:$0xff]
    %v1219 = vld [vmem:[#allocation6 + $0x100] sm:$0xff]
    %v1220 = vld [vmem:[#allocation6 + $0x108] sm:$0xff]
    %v1221 = vld [vmem:[#allocation6 + $0x110] sm:$0xff]
    %v1222 = vld [vmem:[#allocation6 + $0x118] sm:$0xff]
    %v1223 = vld [vmem:[#allocation6 + $0x120] sm:$0xff]
    %v1224 = vld [vmem:[#allocation6 + $0x128] sm:$0xff]
    %v1225 = vld [vmem:[#allocation6 + $0x130] sm:$0xff]
    %v1226 = vld [vmem:[#allocation6 + $0x138] sm:$0xff]
    %v1227 = vld [vmem:[#allocation6 + $0x140] sm:$0xff]
    %v1228 = vld [vmem:[#allocation6 + $0x148] sm:$0xff]
    %v1229 = vld [vmem:[#allocation6 + $0x150] sm:$0xff]
    %v1230 = vld [vmem:[#allocation6 + $0x158] sm:$0xff]
    %v1231 = vld [vmem:[#allocation6 + $0x160] sm:$0xff]
    %v1232 = vld [vmem:[#allocation6 + $0x168] sm:$0xff]
    %v1233 = vld [vmem:[#allocation6 + $0x170] sm:$0xff]
    %v1234 = vld [vmem:[#allocation6 + $0x178] sm:$0xff]
    %v1235 = vld [vmem:[#allocation6 + $0x180] sm:$0xff]
    %v1236 = vld [vmem:[#allocation6 + $0x188] sm:$0xff]
    %v1237 = vld [vmem:[#allocation6 + $0x190] sm:$0xff]
    %v1238 = vld [vmem:[#allocation6 + $0x198] sm:$0xff]
    %v1239 = vld [vmem:[#allocation6 + $0x1a0] sm:$0xff]
    %v1240 = vld [vmem:[#allocation6 + $0x1a8] sm:$0xff]
    %v1241 = vld [vmem:[#allocation6 + $0x1b0] sm:$0xff]
    %v1242 = vld [vmem:[#allocation6 + $0x1b8] sm:$0xff]
    %v1243 = vld [vmem:[#allocation6 + $0x1c0] sm:$0xff]
    %v1244 = vld [vmem:[#allocation6 + $0x1c8] sm:$0xff]
    %v1245 = vld [vmem:[#allocation6 + $0x1d0] sm:$0xff]
    %v1246 = vld [vmem:[#allocation6 + $0x1d8] sm:$0xff]
    %v1247 = vld [vmem:[#allocation6 + $0x1e0] sm:$0xff]
    %v1248 = vld [vmem:[#allocation6 + $0x1e8] sm:$0xff]
    %v1249 = vld [vmem:[#allocation6 + $0x1f0] sm:$0xff]
    %v1250 = vld [vmem:[#allocation6 + $0x1f8] sm:$0xff]
    %v1251 = vld [vmem:[%s10] sm:$0x1]
    %v1253 = vperm.slane %v1251, 0
    %1255 = vmatpush.msra.mxu0 %v1202
    %1256 = vmatpush.msra.mxu0 %v1201
    %1257 = vmatpush.msra.mxu0 %v1200
    %1258 = vmatpush.msra.mxu0 %v1199
    %1259 = vmatpush.msra.mxu0 %v1198
    %1260 = vmatpush.msra.mxu0 %v1197
    %1261 = vmatpush.msra.mxu0 %v1196
    %1262 = vmatpush.msra.mxu0 %v1195
    %1263 = vmatpush.msra.mxu0 %v1194
    %1264 = vmatpush.msra.mxu0 %v1193
    %1265 = vmatpush.msra.mxu0 %v1192
    %1266 = vmatpush.msra.mxu0 %v1191
    %1267 = vmatpush.msra.mxu0 %v1190
    %1268 = vmatpush.msra.mxu0 %v1189
    %1269 = vmatpush.msra.mxu0 %v1188
    %1270 = vmatpush.msra.mxu0 %v1187
    %1271 = vmatmul.f32.gmra.mxu0 %v1183
    %v1272 = vpop.f32.mrf.mxu0
    %v1273 = vadd.f32 %v1253, %v1272
    %1274 = vdwg.mxu0
    %1275 = vmatpush.msra.mxu0 %v1218
    %1276 = vmatpush.msra.mxu0 %v1217
    %1277 = vmatpush.msra.mxu0 %v1216
    %1278 = vmatpush.msra.mxu0 %v1215
    %1279 = vmatpush.msra.mxu0 %v1214
    %1280 = vmatpush.msra.mxu0 %v1213
    %1281 = vmatpush.msra.mxu0 %v1212
    %1282 = vmatpush.msra.mxu0 %v1211
    %1283 = vmatpush.msra.mxu0 %v1210
    %1284 = vmatpush.msra.mxu0 %v1209
    %1285 = vmatpush.msra.mxu0 %v1208
    %1286 = vmatpush.msra.mxu0 %v1207
    %1287 = vmatpush.msra.mxu0 %v1206
    %1288 = vmatpush.msra.mxu0 %v1205
    %1289 = vmatpush.msra.mxu0 %v1204
    %1290 = vmatpush.msra.mxu0 %v1203
    %1291 = vmatmul.f32.gmra.mxu0 %v1184
    %v1292 = vpop.f32.mrf.mxu0
    %v1293 = vadd.f32 %v1273, %v1292
    %1294 = vdwg.mxu0
    %1295 = vmatpush.msra.mxu0 %v1234
    %1296 = vmatpush.msra.mxu0 %v1233
    %1297 = vmatpush.msra.mxu0 %v1232
    %1298 = vmatpush.msra.mxu0 %v1231
    %1299 = vmatpush.msra.mxu0 %v1230
    %1300 = vmatpush.msra.mxu0 %v1229
    %1301 = vmatpush.msra.mxu0 %v1228
    %1302 = vmatpush.msra.mxu0 %v1227
    %1303 = vmatpush.msra.mxu0 %v1226
    %1304 = vmatpush.msra.mxu0 %v1225
    %1305 = vmatpush.msra.mxu0 %v1224
    %1306 = vmatpush.msra.mxu0 %v1223
    %1307 = vmatpush.msra.mxu0 %v1222
    %1308 = vmatpush.msra.mxu0 %v1221
    %1309 = vmatpush.msra.mxu0 %v1220
    %1310 = vmatpush.msra.mxu0 %v1219
    %1311 = vmatmul.f32.gmra.mxu0 %v1185
    %v1312 = vpop.f32.mrf.mxu0
    %v1313 = vadd.f32 %v1293, %v1312
    %1314 = vdwg.mxu0
    %1315 = vmatpush.msra.mxu0 %v1250
    %1316 = vmatpush.msra.mxu0 %v1249
    %1317 = vmatpush.msra.mxu0 %v1248
    %1318 = vmatpush.msra.mxu0 %v1247
    %1319 = vmatpush.msra.mxu0 %v1246
    %1320 = vmatpush.msra.mxu0 %v1245
    %1321 = vmatpush.msra.mxu0 %v1244
    %1322 = vmatpush.msra.mxu0 %v1243
    %1323 = vmatpush.msra.mxu0 %v1242
    %1324 = vmatpush.msra.mxu0 %v1241
    %1325 = vmatpush.msra.mxu0 %v1240
    %1326 = vmatpush.msra.mxu0 %v1239
    %1327 = vmatpush.msra.mxu0 %v1238
    %1328 = vmatpush.msra.mxu0 %v1237
    %1329 = vmatpush.msra.mxu0 %v1236
    %1330 = vmatpush.msra.mxu0 %v1235
    %1331 = vmatmul.f32.gmra.mxu0 %v1186
    %v1332 = vpop.f32.mrf.mxu0
    %v1333 = vadd.f32 %v1313, %v1332
    %1334 = vdwg.mxu0
    %v1335 = vmax.f32 %v1333, 0.0
    %v1336 = vld [vmem:[%s11] sm:$0x1]
    %v1337 = vld [vmem:[#allocation2] sm:$0x1]
    %1339 = vset.pattern.permute.xlu0 0
    %1340 = vperm.xlu0 %1339, %v1337
    %v1341 = vpop.permute.xlu0 %1340
    %v1343 = vperm.slane %v1341, 0
    %1344 = vmatpush.xpose.msra.mxu0 0.0
    %1345 = vmatpush.xpose.msra.mxu0 0.0
    %1346 = vmatpush.xpose.msra.mxu0 0.0
    %1347 = vmatpush.xpose.msra.mxu0 0.0
    %1348 = vmatpush.xpose.msra.mxu0 0.0
    %1349 = vmatpush.xpose.msra.mxu0 0.0
    %1350 = vmatpush.xpose.msra.mxu0 0.0
    %1351 = vmatpush.xpose.msra.mxu0 0.0
    %1352 = vmatpush.xpose.msra.mxu0 0.0
    %1353 = vmatpush.xpose.msra.mxu0 0.0
    %1354 = vmatpush.xpose.msra.mxu0 0.0
    %1355 = vmatpush.xpose.msra.mxu0 0.0
    %1356 = vmatpush.xpose.msra.mxu0 0.0
    %1357 = vmatpush.xpose.msra.mxu0 0.0
    %1358 = vmatpush.xpose.msra.mxu0 0.0
    %1359 = vmatpush.xpose.msra.mxu0 %v1335
    %1360 = vmatmul.f32.gmra.mxu0 %v1336
    %v1361 = vpop.f32.mrf.mxu0
    %v1362 = vadd.f32 %v1343, %v1361
    %1363 = vdwg.mxu0
    %v1364 = vsub.f32 0.0, %v1362
    %v1365 = vmul.f32 %v1364, 1.442695
    %v1366 = vpow.pop %v1365
    %v1367 = vadd.f32 %v1366, 1.0
    %v1368 = vrcp.pop %v1367
    %v1369 = vmul.f32 %v1367, %v1368
    %v1370 = vsub.f32 1.0, %v1369
    %v1371 = vmul.f32 %v1368, %v1370
    %v1372 = vadd.f32 %v1368, %v1371
    %vm1373 = vweird.f32 %v1367
    %vm1374 = vweird.f32 %v1368
    %vm1375 = vmor %vm1373, %vm1374
    %v1376 = vsel %vm1375, %v1368, %v1372
    %v1377 = vand.u32 2147483647, %v1367
    %vm1378 = vcmp.eq.f32.partialorder %v1377, 8.507059e+37
    %v1379 = vand.u32 %v1367, 2147483648
    %v1380 = vor.u32 1.1754944e-38, %v1379
    %v1381 = vsel %vm1378, %v1380, %v1376
    %vm1382 = vcmask 57344
    %1383 = vst.msk [vmem:[#allocation8] sm:$0x1] %vm1382, %v1381
    // Predicated region
    $region62: #{tpu_custom_call.1} parent=1 // pred_check
      _
    $region63: #{tpu_custom_call.1} parent=1 // pred_check_branch
      %1385 = sbr.rel (0) target = $region65
    $region64: #{tpu_custom_call.1} parent=1 // pred_region
      %1387 = vsyncadd [#allocation5], 0
      %s1389 = sshll.u32 [#allocation8], 4
      %s1390 = int_to_ptr.vmem [resolvable:$true] %s1389
      %s1391 = sshll.u32 %s13, 4
      %s1392 = int_to_ptr.hbm [resolvable:$true] %s1391
      %1394 = dma.vmem_to_hbm [thread:$0]  %s1390, 16, %s1392, [#allocation5]
    $region65: #{tpu_custom_call.1} parent=1 // pred_fallthru
      _
    // Predicated region
    $region66: #{tpu_custom_call.1} parent=1 // pred_check
      _
    $region67: #{tpu_custom_call.1} parent=1 // pred_check_branch
      %1396 = sbr.rel (0) target = $region69
    $region68: #{tpu_custom_call.1} parent=1 // pred_region
      %1398 = dma.done [#allocation5], 16
    $region69: #{tpu_custom_call.1} parent=1 // pred_fallthru
      _
    %1399 = vsyncpa [#allocation4], 1
    %1400 = vsyncpa [#allocation7], 1
    %1401 = vsyncpa [#allocation5], 1

</llo_original>
